<compile_context>
chip_gen: v7x
topology: tpu7x:2x2x1
jax: 0.10.0
libtpu: 0.0.40
codegen_flags: <defaults>
</compile_context>

<pallas_src>
import functools

import jax
import jax.numpy as jnp
from jax.experimental import pallas as pl
from jax.experimental.pallas import tpu as pltpu

LANE = 128
_VMEM_LIMIT = 48 * 1024 * 1024  # < 64 MiB physical VMEM on v7x


def _round_up(v, m):
    return ((v + m - 1) // m) * m


# ------------------------- kernel 1: fused projection ------------------------
def _proj_kernel(x_ref, w_ref, b_ref, hl_ref, hr_ref):
    """h = x @ [W_l | W_r]; split into neighbor branch (bf16) / self branch (+bias, f32)."""
    h = jnp.dot(x_ref[...], w_ref[...], preferred_element_type=jnp.float32)
    fo = hl_ref.shape[-1]                      # lane-aligned split point (multiple of 128)
    hl_ref[...] = h[:, :fo].astype(hl_ref.dtype)
    hr_ref[...] = (h[:, fo:] + b_ref[...]).astype(hr_ref.dtype)


def _proj_pallas(x_p, w_cat, b_p, *, tm):
    n_p, f_in_p = x_p.shape
    f_out_p = w_cat.shape[1] // 2
    return pl.pallas_call(
        _proj_kernel,
        out_shape=(
            jax.ShapeDtypeStruct((n_p, f_out_p), jnp.bfloat16),  # h_l feeds the A matmul
            jax.ShapeDtypeStruct((n_p, f_out_p), jnp.float32),   # h_r (+bias) for epilogue
        ),
        grid_spec=pltpu.PrefetchScalarGridSpec(
            num_scalar_prefetch=0,
            grid=(n_p // tm,),
            in_specs=[
                pl.BlockSpec((tm, f_in_p), lambda i: (i, 0)),
                pl.BlockSpec((f_in_p, 2 * f_out_p), lambda i: (0, 0)),   # resident
                pl.BlockSpec((1, f_out_p), lambda i: (0, 0)),            # resident
            ],
            out_specs=[
                pl.BlockSpec((tm, f_out_p), lambda i: (i, 0)),
                pl.BlockSpec((tm, f_out_p), lambda i: (i, 0)),
            ],
        ),
        compiler_params=pltpu.CompilerParams(
            dimension_semantics=("parallel",),
            vmem_limit_bytes=_VMEM_LIMIT,
        ),
    )(x_p, w_cat, b_p)


# ---------------------- kernel 2: tiled mean aggregation ---------------------
def _agg_kernel(apply_relu, a_ref, hl_ref, hr_ref, dinv_ref, o_ref, acc_ref):
    """acc += A_cnt[i,k] @ h_l[k]; epilogue: out = (1/deg)*acc + h_r (+relu)."""
    k = pl.program_id(1)

    @pl.when(k == 0)
    def _():
        acc_ref[...] = jnp.zeros_like(acc_ref)

    acc_ref[...] += jnp.dot(a_ref[...], hl_ref[...], preferred_element_type=jnp.float32)

    @pl.when(k == pl.num_programs(1) - 1)
    def _():
        out = acc_ref[...] * dinv_ref[...] + hr_ref[...]
        if apply_relu:
            out = jnp.maximum(out, 0.0)
        o_ref[...] = out.astype(o_ref.dtype)


def _agg_pallas(a_cnt, h_l, h_r, deg_inv, *, apply_relu, tm, tk, out_dtype):
    n_p = a_cnt.shape[0]
    f_out_p = h_l.shape[1]
    kernel = functools.partial(_agg_kernel, apply_relu)
    cost = pl.CostEstimate(
        flops=2 * n_p * n_p * f_out_p,
        transcendentals=0,
        bytes_accessed=n_p * n_p * 2 + n_p * f_out_p * (2 + 4 + out_dtype.dtype.itemsize
                                                        if hasattr(out_dtype, "dtype") else 8),
    )
    return pl.pallas_call(
        kernel,
        out_shape=jax.ShapeDtypeStruct((n_p, f_out_p), out_dtype),
        grid_spec=pltpu.PrefetchScalarGridSpec(
            num_scalar_prefetch=0,
            grid=(n_p // tm, n_p // tk),          # reduction (neighbor) axis last
            in_specs=[
                pl.BlockSpec((tm, tk), lambda i, k: (i, k)),        # A counts (bf16 stream)
                pl.BlockSpec((tk, f_out_p), lambda i, k: (k, 0)),   # h_l tile
                pl.BlockSpec((tm, f_out_p), lambda i, k: (i, 0)),   # h_r resident across k
                pl.BlockSpec((tm, 1), lambda i, k: (i, 0)),         # 1/deg (exact f32)
            ],
            out_specs=pl.BlockSpec((tm, f_out_p), lambda i, k: (i, 0)),
            scratch_shapes=[pltpu.VMEM((tm, f_out_p), jnp.float32)],
        ),
        compiler_params=pltpu.CompilerParams(
            dimension_semantics=("parallel", "arbitrary"),
            vmem_limit_bytes=_VMEM_LIMIT,
        ),
        cost_estimate=cost,
    )(a_cnt, h_l, h_r, deg_inv)


# --------------------------------- glue (JAX) --------------------------------
def build_adj_mask(edge_index, n_pad):
    """bf16 edge-count matrix A[dst, src] (padded) + exact f32 inverse in-degree."""
    src, dst = edge_index[0], edge_index[1]
    counts = jnp.zeros((n_pad, n_pad), jnp.float32).at[dst, src].add(1.0)
    deg = jnp.sum(counts, axis=1, keepdims=True)
    deg_inv = 1.0 / jnp.clip(deg, 1.0, None)          # isolated nodes -> zero aggregate anyway
    return counts.astype(jnp.bfloat16), deg_inv.astype(jnp.float32)


@functools.partial(jax.jit, static_argnames=("linear", "out_feats"))
def _forward_padded(params, x, edge_index, *, linear, out_feats):
    """Whole padded forward (pad + adjacency build + all layers) compiled once."""
    n, f_in = x.shape
    n_p = _round_up(n, LANE)
    tile = 256 if n_p % 256 == 0 else 128      # bigger tiles when the node count allows

    f_in_p = _round_up(f_in, LANE)
    h = jnp.zeros((n_p, f_in_p), jnp.float32).at[:n, :f_in].set(x).astype(jnp.bfloat16)

    a_cnt, deg_inv = build_adj_mask(edge_index, n_p)

    num_layers = len(params)
    out = None
    for li, (w_cat, b) in enumerate(params):
        last = li == num_layers - 1
        relu = True if last else (not linear)          # final ReLU is unconditional in the spec
        out_dtype = jnp.float32 if last else jnp.bfloat16
        h_l, h_r = _proj_pallas(h, w_cat, b, tm=tile)
        out = _agg_pallas(a_cnt, h_l, h_r, deg_inv,
                          apply_relu=relu, tm=tile, tk=tile, out_dtype=out_dtype)
        if not last:
            h = out                                     # already bf16, no extra cast pass
    return out[:n, :out_feats]


def _kaiming_normal(key, fan_in, fan_out):
    # torch.nn.init.kaiming_normal_ (fan_in mode, relu gain): std = sqrt(2 / fan_in)
    std = jnp.sqrt(2.0 / fan_in)
    return jax.random.normal(key, (fan_in, fan_out), jnp.float32) * std


class GNNLayerPallas:
    """GNNLayer(sageMode='GraphSAGE') forward pass with fused/tiled Pallas SAGEConv layers."""

    def __init__(self, sage_mode, in_feats, out_feats, h_feats, linear,
                 layer_size=2, key=jax.random.PRNGKey(0)):
        if sage_mode != "GraphSAGE":
            # TODO(synk): GAT branch (attention coefficients + dropout) not implemented in Pallas.
            raise NotImplementedError("Only GraphSAGE mode is implemented.")
        self.linear = linear
        self.layer_size = layer_size
        self.in_feats = in_feats
        self.out_feats = out_feats

        dims = ([(in_feats, h_feats)]
                + [(h_feats, h_feats)] * (layer_size - 2)
                + [(h_feats, out_feats)])
        self.params = []        # (W_cat_padded_bf16, bias_padded_f32)
        self._ref_weights = []  # unpadded f32 (W_l, W_r) for the pure-JAX reference
        for fi, fo in dims:
            key, k1, k2 = jax.random.split(key, 3)
            fi_p, fo_p = _round_up(fi, LANE), _round_up(fo, LANE)
            w_l = _kaiming_normal(k1, fi, fo)   # neighbor-aggregate projection
            w_r = _kaiming_normal(k2, fi, fo)   # root/self projection
            w_cat = jnp.zeros((fi_p, 2 * fo_p), jnp.float32)
            w_cat = w_cat.at[:fi, :fo].set(w_l)
            w_cat = w_cat.at[:fi, fo_p:fo_p + fo].set(w_r)
            # TODO(synk): PyG's default bias init not replicated exactly (zeros used here).
            b = jnp.zeros((1, fo_p), jnp.float32)
            self.params.append((w_cat.astype(jnp.bfloat16), b))
            self._ref_weights.append((w_l, w_r))

    def __call__(self, x, edge_index):
        return _forward_padded(self.params, x, edge_index,
                               linear=self.linear, out_feats=self.out_feats)


def _reference_forward(x, edge_index, model):
    """Pure-JAX f32 reference of the same forward pass (bias = 0)."""
    n = x.shape[0]
    src, dst = edge_index[0], edge_index[1]
    a = jnp.zeros((n, n), jnp.float32).at[dst, src].add(1.0)
    a = a / jnp.clip(jnp.sum(a, axis=1, keepdims=True), 1.0, None)
    h = x
    num_layers = len(model._ref_weights)
    for li, (w_l, w_r) in enumerate(model._ref_weights):
        last = li == num_layers - 1
        h = a @ (h @ w_l) + h @ w_r
        if last or not model.linear:
            h = jnp.maximum(h, 0.0)
    return h


# ------------------------------------ main ------------------------------------
if __name__ == "__main__":
    key = jax.random.PRNGKey(0)
    k_x, k_e, k_p = jax.random.split(key, 3)

    num_nodes = 16
    in_feats, h_feats, out_feats = 16, 32, 8
    num_edges = 40

    x = jax.random.normal(k_x, (num_nodes, in_feats), jnp.float32)
    edge_index = jax.random.randint(k_e, (2, num_edges), 0, num_nodes, jnp.int32)

    model = GNNLayerPallas(
        "GraphSAGE", in_feats, out_feats, h_feats, linear=False, layer_size=2, key=k_p
    )

    out = jax.block_until_ready(model(x, edge_index))
    assert out.shape == (num_nodes, out_feats)
    assert bool(jnp.all(out >= 0.0))  # final relu

    ref = _reference_forward(x, edge_index, model)
    assert bool(jnp.allclose(out, ref, rtol=1e-1, atol=1e-1)), (
        f"max abs diff {float(jnp.max(jnp.abs(out - ref)))}"
    )
    print("KERNEL_OK")
</pallas_src>

<mosaic_0001>
module attributes {stable_mosaic.version = 11 : i64} {
  func.func @_proj_kernel(%arg0: i32, %arg1: memref<128x128xbf16, #tpu.memory_space<vmem>>, %arg2: memref<128x256xbf16, #tpu.memory_space<vmem>>, %arg3: memref<1x128xf32, #tpu.memory_space<vmem>>, %arg4: memref<128x128xbf16, #tpu.memory_space<vmem>>, %arg5: memref<128x128xf32, #tpu.memory_space<vmem>>) attributes {dimension_semantics = [#tpu.dimension_semantics<parallel>], iteration_bounds = array<i64: 1>, scalar_prefetch = 0 : i64, scratch_operands = 0 : i64, tpu.core_type = #tpu.core_type<tc>, window_params = [{transform_indices = @transform_0, window_bounds = array<i64: 128, 128>}, {pipeline_mode = #tpu.pipeline_mode<synchronous>, transform_indices = @transform_1, window_bounds = array<i64: 128, 256>}, {pipeline_mode = #tpu.pipeline_mode<synchronous>, transform_indices = @transform_2, window_bounds = array<i64: 1, 128>}, {transform_indices = @transform_3, window_bounds = array<i64: 128, 128>}, {transform_indices = @transform_4, window_bounds = array<i64: 128, 128>}]} {
    %c0 = arith.constant 0 : index
    %c0_0 = arith.constant 0 : index
    %0 = vector.load %arg1[%c0, %c0_0] : memref<128x128xbf16, #tpu.memory_space<vmem>>, vector<128x128xbf16>
    %c0_1 = arith.constant 0 : index
    %c0_2 = arith.constant 0 : index
    %1 = vector.load %arg2[%c0_1, %c0_2] : memref<128x256xbf16, #tpu.memory_space<vmem>>, vector<128x256xbf16>
    %cst = arith.constant dense<0.000000e+00> : vector<128x256xf32>
    %2 = tpu.matmul %0, %1, %cst {dimension_numbers = #tpu.dot_dimension_numbers<[1], [0], [0], [1], [0, 0, 1, 1], [], []>} : vector<128x128xbf16>, vector<128x256xbf16>, vector<128x256xf32> -> vector<128x256xf32>
    %3 = vector.extract_strided_slice %2 {offsets = [0, 0], sizes = [128, 128], strides = [1, 1]} : vector<128x256xf32> to vector<128x128xf32>
    %4 = arith.truncf %3 : vector<128x128xf32> to vector<128x128xbf16>
    %c0_3 = arith.constant 0 : index
    %c0_4 = arith.constant 0 : index
    %5 = vector.load %arg4[%c0_3, %c0_4] : memref<128x128xbf16, #tpu.memory_space<vmem>>, vector<128x128xbf16>
    tpu.vector_store %arg4[%c0_3, %c0_4], %4 {strides = array<i32>} : memref<128x128xbf16, #tpu.memory_space<vmem>>, vector<128x128xbf16>,
    %6 = vector.extract_strided_slice %2 {offsets = [0, 128], sizes = [128, 128], strides = [1, 1]} : vector<128x256xf32> to vector<128x128xf32>
    %c0_5 = arith.constant 0 : index
    %c0_6 = arith.constant 0 : index
    %7 = vector.load %arg3[%c0_5, %c0_6] : memref<1x128xf32, #tpu.memory_space<vmem>>, vector<1x128xf32>
    %8 = vector.broadcast %7 : vector<1x128xf32> to vector<128x128xf32>
    %9 = arith.addf %6, %8 : vector<128x128xf32>
    %c0_7 = arith.constant 0 : index
    %c0_8 = arith.constant 0 : index
    %10 = vector.load %arg5[%c0_7, %c0_8] : memref<128x128xf32, #tpu.memory_space<vmem>>, vector<128x128xf32>
    tpu.vector_store %arg5[%c0_7, %c0_8], %9 {strides = array<i32>} : memref<128x128xf32, #tpu.memory_space<vmem>>, vector<128x128xf32>,
    return
  }
  func.func @transform_0(%arg0: i32) -> (i32, i32) {
    %c0_i32 = arith.constant 0 : i32
    %c0_i32_0 = arith.constant 0 : i32
    return %arg0, %c0_i32 : i32, i32
  }
  func.func @transform_1(%arg0: i32) -> (i32, i32) {
    %c0_i32 = arith.constant 0 : i32
    %c0_i32_0 = arith.constant 0 : i32
    %c0_i32_1 = arith.constant 0 : i32
    return %c0_i32, %c0_i32_0 : i32, i32
  }
  func.func @transform_2(%arg0: i32) -> (i32, i32) {
    %c0_i32 = arith.constant 0 : i32
    %c0_i32_0 = arith.constant 0 : i32
    %c0_i32_1 = arith.constant 0 : i32
    return %c0_i32, %c0_i32_0 : i32, i32
  }
  func.func @transform_3(%arg0: i32) -> (i32, i32) {
    %c0_i32 = arith.constant 0 : i32
    %c0_i32_0 = arith.constant 0 : i32
    return %arg0, %c0_i32 : i32, i32
  }
  func.func @transform_4(%arg0: i32) -> (i32, i32) {
    %c0_i32 = arith.constant 0 : i32
    %c0_i32_0 = arith.constant 0 : i32
    return %arg0, %c0_i32 : i32, i32
  }
}

module attributes {stable_mosaic.version = 11 : i64} {
  func.func @_agg_kernel(%arg0: i32, %arg1: i32, %arg2: memref<128x128xbf16, #tpu.memory_space<vmem>>, %arg3: memref<128x128xbf16, #tpu.memory_space<vmem>>, %arg4: memref<128x128xf32, #tpu.memory_space<vmem>>, %arg5: memref<128x1xf32, #tpu.memory_space<vmem>>, %arg6: memref<128x128xbf16, #tpu.memory_space<vmem>>, %arg7: memref<128x128xf32, #tpu.memory_space<vmem>>) attributes {dimension_semantics = [#tpu.dimension_semantics<parallel>, #tpu.dimension_semantics<arbitrary>], iteration_bounds = array<i64: 1, 1>, scalar_prefetch = 0 : i64, scratch_operands = 1 : i64, tpu.core_type = #tpu.core_type<tc>, window_params = [{transform_indices = @transform_0, window_bounds = array<i64: 128, 128>}, {transform_indices = @transform_1, window_bounds = array<i64: 128, 128>}, {transform_indices = @transform_2, window_bounds = array<i64: 128, 128>}, {transform_indices = @transform_3, window_bounds = array<i64: 128, 1>}, {transform_indices = @transform_4, window_bounds = array<i64: 128, 128>}]} {
    %c0_i32 = arith.constant 0 : i32
    %0 = arith.cmpi eq, %arg1, %c0_i32 : i32
    %1 = arith.extui %0 : i1 to i32
    %c0_i32_0 = arith.constant 0 : i32
    %2 = arith.cmpi ne, %1, %c0_i32_0 : i32
    scf.if %2 {
      %cst_10 = arith.constant 0.000000e+00 : f32
      %12 = vector.broadcast %cst_10 : f32 to vector<128x128xf32>
      %c0_11 = arith.constant 0 : index
      %c0_12 = arith.constant 0 : index
      %13 = vector.load %arg7[%c0_11, %c0_12] : memref<128x128xf32, #tpu.memory_space<vmem>>, vector<128x128xf32>
      tpu.vector_store %arg7[%c0_11, %c0_12], %12 {strides = array<i32>} : memref<128x128xf32, #tpu.memory_space<vmem>>, vector<128x128xf32>,
    } else {
    }
    %c0 = arith.constant 0 : index
    %c0_1 = arith.constant 0 : index
    %3 = vector.load %arg7[%c0, %c0_1] : memref<128x128xf32, #tpu.memory_space<vmem>>, vector<128x128xf32>
    %c0_2 = arith.constant 0 : index
    %c0_3 = arith.constant 0 : index
    %4 = vector.load %arg2[%c0_2, %c0_3] : memref<128x128xbf16, #tpu.memory_space<vmem>>, vector<128x128xbf16>
    %c0_4 = arith.constant 0 : index
    %c0_5 = arith.constant 0 : index
    %5 = vector.load %arg3[%c0_4, %c0_5] : memref<128x128xbf16, #tpu.memory_space<vmem>>, vector<128x128xbf16>
    %cst = arith.constant dense<0.000000e+00> : vector<128x128xf32>
    %6 = tpu.matmul %4, %5, %cst {dimension_numbers = #tpu.dot_dimension_numbers<[1], [0], [0], [1], [0, 0, 1, 1], [], []>} : vector<128x128xbf16>, vector<128x128xbf16>, vector<128x128xf32> -> vector<128x128xf32>
    %7 = arith.addf %3, %6 : vector<128x128xf32>
    %c0_6 = arith.constant 0 : index
    %c0_7 = arith.constant 0 : index
    %8 = vector.load %arg7[%c0_6, %c0_7] : memref<128x128xf32, #tpu.memory_space<vmem>>, vector<128x128xf32>
    tpu.vector_store %arg7[%c0_6, %c0_7], %7 {strides = array<i32>} : memref<128x128xf32, #tpu.memory_space<vmem>>, vector<128x128xf32>,
    %c0_i32_8 = arith.constant 0 : i32
    %9 = arith.cmpi eq, %arg1, %c0_i32_8 : i32
    %10 = arith.extui %9 : i1 to i32
    %c0_i32_9 = arith.constant 0 : i32
    %11 = arith.cmpi ne, %10, %c0_i32_9 : i32
    scf.if %11 {
      %c0_10 = arith.constant 0 : index
      %c0_11 = arith.constant 0 : index
      %12 = vector.load %arg7[%c0_10, %c0_11] : memref<128x128xf32, #tpu.memory_space<vmem>>, vector<128x128xf32>
      %c0_12 = arith.constant 0 : index
      %c0_13 = arith.constant 0 : index
      %13 = vector.load %arg5[%c0_12, %c0_13] : memref<128x1xf32, #tpu.memory_space<vmem>>, vector<128x1xf32>
      %14 = vector.broadcast %13 : vector<128x1xf32> to vector<128x128xf32>
      %15 = arith.mulf %12, %14 : vector<128x128xf32>
      %c0_14 = arith.constant 0 : index
      %c0_15 = arith.constant 0 : index
      %16 = vector.load %arg4[%c0_14, %c0_15] : memref<128x128xf32, #tpu.memory_space<vmem>>, vector<128x128xf32>
      %17 = arith.addf %15, %16 : vector<128x128xf32>
      %cst_16 = arith.constant 0.000000e+00 : f32
      %18 = vector.broadcast %cst_16 : f32 to vector<128x128xf32>
      %19 = arith.maximumf %17, %18 : vector<128x128xf32>
      %20 = arith.truncf %19 : vector<128x128xf32> to vector<128x128xbf16>
      %c0_17 = arith.constant 0 : index
      %c0_18 = arith.constant 0 : index
      %21 = vector.load %arg6[%c0_17, %c0_18] : memref<128x128xbf16, #tpu.memory_space<vmem>>, vector<128x128xbf16>
      tpu.vector_store %arg6[%c0_17, %c0_18], %20 {strides = array<i32>} : memref<128x128xbf16, #tpu.memory_space<vmem>>, vector<128x128xbf16>,
    } else {
    }
    return
  }
  func.func @transform_0(%arg0: i32, %arg1: i32) -> (i32, i32) {
    %c0_i32 = arith.constant 0 : i32
    return %arg0, %arg1 : i32, i32
  }
  func.func @transform_1(%arg0: i32, %arg1: i32) -> (i32, i32) {
    %c0_i32 = arith.constant 0 : i32
    %c0_i32_0 = arith.constant 0 : i32
    return %arg1, %c0_i32 : i32, i32
  }
  func.func @transform_2(%arg0: i32, %arg1: i32) -> (i32, i32) {
    %c0_i32 = arith.constant 0 : i32
    %c0_i32_0 = arith.constant 0 : i32
    return %arg0, %c0_i32 : i32, i32
  }
  func.func @transform_3(%arg0: i32, %arg1: i32) -> (i32, i32) {
    %c0_i32 = arith.constant 0 : i32
    %c0_i32_0 = arith.constant 0 : i32
    return %arg0, %c0_i32 : i32, i32
  }
  func.func @transform_4(%arg0: i32, %arg1: i32) -> (i32, i32) {
    %c0_i32 = arith.constant 0 : i32
    %c0_i32_0 = arith.constant 0 : i32
    return %arg0, %c0_i32 : i32, i32
  }
}

module attributes {stable_mosaic.version = 11 : i64} {
  func.func @_agg_kernel(%arg0: i32, %arg1: i32, %arg2: memref<128x128xbf16, #tpu.memory_space<vmem>>, %arg3: memref<128x128xbf16, #tpu.memory_space<vmem>>, %arg4: memref<128x128xf32, #tpu.memory_space<vmem>>, %arg5: memref<128x1xf32, #tpu.memory_space<vmem>>, %arg6: memref<128x128xf32, #tpu.memory_space<vmem>>, %arg7: memref<128x128xf32, #tpu.memory_space<vmem>>) attributes {dimension_semantics = [#tpu.dimension_semantics<parallel>, #tpu.dimension_semantics<arbitrary>], iteration_bounds = array<i64: 1, 1>, scalar_prefetch = 0 : i64, scratch_operands = 1 : i64, tpu.core_type = #tpu.core_type<tc>, window_params = [{transform_indices = @transform_0, window_bounds = array<i64: 128, 128>}, {transform_indices = @transform_1, window_bounds = array<i64: 128, 128>}, {transform_indices = @transform_2, window_bounds = array<i64: 128, 128>}, {transform_indices = @transform_3, window_bounds = array<i64: 128, 1>}, {transform_indices = @transform_4, window_bounds = array<i64: 128, 128>}]} {
    %c0_i32 = arith.constant 0 : i32
    %0 = arith.cmpi eq, %arg1, %c0_i32 : i32
    %1 = arith.extui %0 : i1 to i32
    %c0_i32_0 = arith.constant 0 : i32
    %2 = arith.cmpi ne, %1, %c0_i32_0 : i32
    scf.if %2 {
      %cst_10 = arith.constant 0.000000e+00 : f32
      %12 = vector.broadcast %cst_10 : f32 to vector<128x128xf32>
      %c0_11 = arith.constant 0 : index
      %c0_12 = arith.constant 0 : index
      %13 = vector.load %arg7[%c0_11, %c0_12] : memref<128x128xf32, #tpu.memory_space<vmem>>, vector<128x128xf32>
      tpu.vector_store %arg7[%c0_11, %c0_12], %12 {strides = array<i32>} : memref<128x128xf32, #tpu.memory_space<vmem>>, vector<128x128xf32>,
    } else {
    }
    %c0 = arith.constant 0 : index
    %c0_1 = arith.constant 0 : index
    %3 = vector.load %arg7[%c0, %c0_1] : memref<128x128xf32, #tpu.memory_space<vmem>>, vector<128x128xf32>
    %c0_2 = arith.constant 0 : index
    %c0_3 = arith.constant 0 : index
    %4 = vector.load %arg2[%c0_2, %c0_3] : memref<128x128xbf16, #tpu.memory_space<vmem>>, vector<128x128xbf16>
    %c0_4 = arith.constant 0 : index
    %c0_5 = arith.constant 0 : index
    %5 = vector.load %arg3[%c0_4, %c0_5] : memref<128x128xbf16, #tpu.memory_space<vmem>>, vector<128x128xbf16>
    %cst = arith.constant dense<0.000000e+00> : vector<128x128xf32>
    %6 = tpu.matmul %4, %5, %cst {dimension_numbers = #tpu.dot_dimension_numbers<[1], [0], [0], [1], [0, 0, 1, 1], [], []>} : vector<128x128xbf16>, vector<128x128xbf16>, vector<128x128xf32> -> vector<128x128xf32>
    %7 = arith.addf %3, %6 : vector<128x128xf32>
    %c0_6 = arith.constant 0 : index
    %c0_7 = arith.constant 0 : index
    %8 = vector.load %arg7[%c0_6, %c0_7] : memref<128x128xf32, #tpu.memory_space<vmem>>, vector<128x128xf32>
    tpu.vector_store %arg7[%c0_6, %c0_7], %7 {strides = array<i32>} : memref<128x128xf32, #tpu.memory_space<vmem>>, vector<128x128xf32>,
    %c0_i32_8 = arith.constant 0 : i32
    %9 = arith.cmpi eq, %arg1, %c0_i32_8 : i32
    %10 = arith.extui %9 : i1 to i32
    %c0_i32_9 = arith.constant 0 : i32
    %11 = arith.cmpi ne, %10, %c0_i32_9 : i32
    scf.if %11 {
      %c0_10 = arith.constant 0 : index
      %c0_11 = arith.constant 0 : index
      %12 = vector.load %arg7[%c0_10, %c0_11] : memref<128x128xf32, #tpu.memory_space<vmem>>, vector<128x128xf32>
      %c0_12 = arith.constant 0 : index
      %c0_13 = arith.constant 0 : index
      %13 = vector.load %arg5[%c0_12, %c0_13] : memref<128x1xf32, #tpu.memory_space<vmem>>, vector<128x1xf32>
      %14 = vector.broadcast %13 : vector<128x1xf32> to vector<128x128xf32>
      %15 = arith.mulf %12, %14 : vector<128x128xf32>
      %c0_14 = arith.constant 0 : index
      %c0_15 = arith.constant 0 : index
      %16 = vector.load %arg4[%c0_14, %c0_15] : memref<128x128xf32, #tpu.memory_space<vmem>>, vector<128x128xf32>
      %17 = arith.addf %15, %16 : vector<128x128xf32>
      %cst_16 = arith.constant 0.000000e+00 : f32
      %18 = vector.broadcast %cst_16 : f32 to vector<128x128xf32>
      %19 = arith.maximumf %17, %18 : vector<128x128xf32>
      %c0_17 = arith.constant 0 : index
      %c0_18 = arith.constant 0 : index
      %20 = vector.load %arg6[%c0_17, %c0_18] : memref<128x128xf32, #tpu.memory_space<vmem>>, vector<128x128xf32>
      tpu.vector_store %arg6[%c0_17, %c0_18], %19 {strides = array<i32>} : memref<128x128xf32, #tpu.memory_space<vmem>>, vector<128x128xf32>,
    } else {
    }
    return
  }
  func.func @transform_0(%arg0: i32, %arg1: i32) -> (i32, i32) {
    %c0_i32 = arith.constant 0 : i32
    return %arg0, %arg1 : i32, i32
  }
  func.func @transform_1(%arg0: i32, %arg1: i32) -> (i32, i32) {
    %c0_i32 = arith.constant 0 : i32
    %c0_i32_0 = arith.constant 0 : i32
    return %arg1, %c0_i32 : i32, i32
  }
  func.func @transform_2(%arg0: i32, %arg1: i32) -> (i32, i32) {
    %c0_i32 = arith.constant 0 : i32
    %c0_i32_0 = arith.constant 0 : i32
    return %arg0, %c0_i32 : i32, i32
  }
  func.func @transform_3(%arg0: i32, %arg1: i32) -> (i32, i32) {
    %c0_i32 = arith.constant 0 : i32
    %c0_i32_0 = arith.constant 0 : i32
    return %arg0, %c0_i32 : i32, i32
  }
  func.func @transform_4(%arg0: i32, %arg1: i32) -> (i32, i32) {
    %c0_i32 = arith.constant 0 : i32
    %c0_i32_0 = arith.constant 0 : i32
    return %arg0, %c0_i32 : i32, i32
  }
}

</mosaic_0001>

<llo_original>
// kernel: _forward_padded.4
$region0: #{_forward_padded.4}
  #allocation0 [shape = 'u32[]', space=smem, size = 0x4, offset = 0x4, fixed_abs, tag = 'smem constant byte address 0x4 - core index']
  #allocation1 [shape = 'u32[144,128]{1,0:T(1,128)}', space=vmem, size = 0x12000, scoped, tag = 'internal scratch']
  %s0 = inlined_call_operand.vmem [shape: bf16[128,128], index: 0, kind: input, shape index: {}]
  %s1 = inlined_call_operand.vmem [shape: bf16[128,256], index: 1, kind: input, shape index: {}]
  %s2 = inlined_call_operand.vmem [shape: f32[1,128], index: 2, kind: input, shape index: {}]
  %s3 = inlined_call_operand.vmem [shape: bf16[128,128], index: 3, kind: output, shape index: {0}]
  %s4 = inlined_call_operand.vmem [shape: f32[128,128], index: 4, kind: output, shape index: {1}]
  %5 = xla_tuple %s3, %s4
  %s6 = sld [smem:[#allocation0]]
  $region30: #{_forward_padded.4} parent=0
    _
  %s8 = ssub.s32 1, %s6
  %s9 = scalar_select 0, %s8, %s6
  // Predicated region
  $region2: #{_forward_padded.4} parent=0 // pred_check
    _
  $region3: #{_forward_padded.4} parent=0 // pred_check_branch
    %11 = sbr.rel (0) target = $region5
  $region4: #{_forward_padded.4} parent=0 // pred_region
    _
  $region5: #{_forward_padded.4} parent=0 // pred_fallthru
    _
  // Predicated region
  $region6: #{_forward_padded.4} parent=0 // pred_check
    _
  $region7: #{_forward_padded.4} parent=0 // pred_check_branch
    %13 = sbr.rel (0) target = $region9
  $region8: #{_forward_padded.4} parent=0 // pred_region
    _
  $region9: #{_forward_padded.4} parent=0 // pred_fallthru
    _
  // Predicated region
  $region10: #{_forward_padded.4} parent=0 // pred_check
    _
  $region11: #{_forward_padded.4} parent=0 // pred_check_branch
    %15 = sbr.rel (0) target = $region13
  $region12: #{_forward_padded.4} parent=0 // pred_region
    _
  $region13: #{_forward_padded.4} parent=0 // pred_fallthru
    _
  %v17 = vld [vmem:[%s0] sm:$0xf]
  %v18 = vld [vmem:[%s0 + $0x4] sm:$0xf]
  %v19 = vld [vmem:[%s0 + $0x8] sm:$0xf]
  %v20 = vld [vmem:[%s0 + $0xc] sm:$0xf]
  %v21 = vld [vmem:[%s0 + $0x10] sm:$0xf]
  %v22 = vld [vmem:[%s0 + $0x14] sm:$0xf]
  %v23 = vld [vmem:[%s0 + $0x18] sm:$0xf]
  %v24 = vld [vmem:[%s0 + $0x1c] sm:$0xf]
  %v25 = vld [vmem:[%s0 + $0x20] sm:$0xf]
  %v26 = vld [vmem:[%s0 + $0x24] sm:$0xf]
  %v27 = vld [vmem:[%s0 + $0x28] sm:$0xf]
  %v28 = vld [vmem:[%s0 + $0x2c] sm:$0xf]
  %v29 = vld [vmem:[%s0 + $0x30] sm:$0xf]
  %v30 = vld [vmem:[%s0 + $0x34] sm:$0xf]
  %v31 = vld [vmem:[%s0 + $0x38] sm:$0xf]
  %v32 = vld [vmem:[%s0 + $0x3c] sm:$0xf]
  %v33 = vld [vmem:[%s1] sm:$0xff]
  %v34 = vld [vmem:[%s1 + $0x8] sm:$0xff]
  %v35 = vld [vmem:[%s1 + $0x10] sm:$0xff]
  %v36 = vld [vmem:[%s1 + $0x18] sm:$0xff]
  %v37 = vld [vmem:[%s1 + $0x20] sm:$0xff]
  %v38 = vld [vmem:[%s1 + $0x28] sm:$0xff]
  %v39 = vld [vmem:[%s1 + $0x30] sm:$0xff]
  %v40 = vld [vmem:[%s1 + $0x38] sm:$0xff]
  %v41 = vld [vmem:[%s1 + $0x40] sm:$0xff]
  %v42 = vld [vmem:[%s1 + $0x48] sm:$0xff]
  %v43 = vld [vmem:[%s1 + $0x50] sm:$0xff]
  %v44 = vld [vmem:[%s1 + $0x58] sm:$0xff]
  %v45 = vld [vmem:[%s1 + $0x60] sm:$0xff]
  %v46 = vld [vmem:[%s1 + $0x68] sm:$0xff]
  %v47 = vld [vmem:[%s1 + $0x70] sm:$0xff]
  %v48 = vld [vmem:[%s1 + $0x78] sm:$0xff]
  %v65 = vunpack.c.l.b16 %v17
  %v66 = vunpack.c.l.b16 %v18
  %v67 = vunpack.c.l.b16 %v19
  %v68 = vunpack.c.l.b16 %v20
  %v69 = vunpack.c.l.b16 %v21
  %v70 = vunpack.c.l.b16 %v22
  %v71 = vunpack.c.l.b16 %v23
  %v72 = vunpack.c.l.b16 %v24
  %v73 = vunpack.c.l.b16 %v25
  %v74 = vunpack.c.l.b16 %v26
  %v75 = vunpack.c.l.b16 %v27
  %v76 = vunpack.c.l.b16 %v28
  %v77 = vunpack.c.l.b16 %v29
  %v78 = vunpack.c.l.b16 %v30
  %v79 = vunpack.c.l.b16 %v31
  %v80 = vunpack.c.l.b16 %v32
  %v81 = vpack.c.b16 %v66, %v65
  %v82 = vpack.c.b16 %v68, %v67
  %v83 = vpack.c.b16 %v70, %v69
  %v84 = vpack.c.b16 %v72, %v71
  %v85 = vpack.c.b16 %v74, %v73
  %v86 = vpack.c.b16 %v76, %v75
  %v87 = vpack.c.b16 %v78, %v77
  %v88 = vpack.c.b16 %v80, %v79
  %v113 = vunpack.c.l.b16 %v33
  %v114 = vunpack.c.h.b16 %v33
  %v115 = vunpack.c.l.b16 %v34
  %v116 = vunpack.c.h.b16 %v34
  %v117 = vunpack.c.l.b16 %v35
  %v118 = vunpack.c.h.b16 %v35
  %v119 = vunpack.c.l.b16 %v36
  %v120 = vunpack.c.h.b16 %v36
  %v121 = vunpack.c.l.b16 %v37
  %v122 = vunpack.c.h.b16 %v37
  %v123 = vunpack.c.l.b16 %v38
  %v124 = vunpack.c.h.b16 %v38
  %v125 = vunpack.c.l.b16 %v39
  %v126 = vunpack.c.h.b16 %v39
  %v127 = vunpack.c.l.b16 %v40
  %v128 = vunpack.c.h.b16 %v40
  %v129 = vunpack.c.l.b16 %v41
  %v130 = vunpack.c.h.b16 %v41
  %v131 = vunpack.c.l.b16 %v42
  %v132 = vunpack.c.h.b16 %v42
  %v133 = vunpack.c.l.b16 %v43
  %v134 = vunpack.c.h.b16 %v43
  %v135 = vunpack.c.l.b16 %v44
  %v136 = vunpack.c.h.b16 %v44
  %v137 = vunpack.c.l.b16 %v45
  %v138 = vunpack.c.h.b16 %v45
  %v139 = vunpack.c.l.b16 %v46
  %v140 = vunpack.c.h.b16 %v46
  %v141 = vunpack.c.l.b16 %v47
  %v142 = vunpack.c.h.b16 %v47
  %v143 = vunpack.c.l.b16 %v48
  %v144 = vunpack.c.h.b16 %v48
  %v145 = vpack.c.b16 %v115, %v113
  %v146 = vpack.c.b16 %v116, %v114
  %v147 = vpack.c.b16 %v119, %v117
  %v148 = vpack.c.b16 %v120, %v118
  %v149 = vpack.c.b16 %v123, %v121
  %v150 = vpack.c.b16 %v124, %v122
  %v151 = vpack.c.b16 %v127, %v125
  %v152 = vpack.c.b16 %v128, %v126
  %v153 = vpack.c.b16 %v131, %v129
  %v154 = vpack.c.b16 %v132, %v130
  %v155 = vpack.c.b16 %v135, %v133
  %v156 = vpack.c.b16 %v136, %v134
  %v157 = vpack.c.b16 %v139, %v137
  %v158 = vpack.c.b16 %v140, %v138
  %v159 = vpack.c.b16 %v143, %v141
  %v160 = vpack.c.b16 %v144, %v142
  %177 = vmatprep.subr.bf16.mxu0 %v146
  %178 = vmatpush1.bf16.msra.mxu0 %v145
  %179 = vmatprep.subr.bf16.mxu0 %v148
  %180 = vmatpush1.bf16.msra.mxu0 %v147
  %181 = vmatprep.subr.bf16.mxu0 %v150
  %182 = vmatpush1.bf16.msra.mxu0 %v149
  %183 = vmatprep.subr.bf16.mxu0 %v152
  %184 = vmatpush1.bf16.msra.mxu0 %v151
  %185 = vmatprep.subr.bf16.mxu0 %v154
  %186 = vmatpush1.bf16.msra.mxu0 %v153
  %187 = vmatprep.subr.bf16.mxu0 %v156
  %188 = vmatpush1.bf16.msra.mxu0 %v155
  %189 = vmatprep.subr.bf16.mxu0 %v158
  %190 = vmatpush1.bf16.msra.mxu0 %v157
  %191 = vmatprep.subr.bf16.mxu0 %v160
  %192 = vmatpush1.bf16.msra.mxu0 %v159
  %193 = vmatprep.subr.bf16.mxu0 0
  %194 = vmatpush1.bf16.msra.mxu0 0
  %195 = vmatprep.subr.bf16.mxu0 0
  %196 = vmatpush1.bf16.msra.mxu0 0
  %197 = vmatprep.subr.bf16.mxu0 0
  %198 = vmatpush1.bf16.msra.mxu0 0
  %199 = vmatprep.subr.bf16.mxu0 0
  %200 = vmatpush1.bf16.msra.mxu0 0
  %201 = vmatprep.subr.bf16.mxu0 0
  %202 = vmatpush1.bf16.msra.mxu0 0
  %203 = vmatprep.subr.bf16.mxu0 0
  %204 = vmatpush1.bf16.msra.mxu0 0
  %205 = vmatprep.subr.bf16.mxu0 0
  %206 = vmatpush1.bf16.msra.mxu0 0
  %207 = vmatprep.subr.bf16.mxu0 0
  %208 = vmatpush1.bf16.msra.mxu0 0
  %209 = vmatprep.mubr.bf16.mxu0 0
  %210 = vmatmul.mubr.bf16.gmra.mrb[0].mxu0 %v81
  %v211 = vpop.f32.mrb[0].mxu0
  %v212 = vadd.f32 0.0, %v211
  %v213 = vpop.f32.mrb[0].mxu0
  %v214 = vadd.f32 0.0, %v213
  %v215 = vpop.f32.mrb[0].mxu0
  %v216 = vadd.f32 0.0, %v215
  %v217 = vpop.f32.mrb[0].mxu0
  %v218 = vadd.f32 0.0, %v217
  %219 = vmatprep.mubr.bf16.mxu0 0
  %220 = vmatmul.mubr.bf16.gmra.mrb[0].mxu0 %v82
  %v221 = vpop.f32.mrb[0].mxu0
  %v222 = vadd.f32 0.0, %v221
  %v223 = vpop.f32.mrb[0].mxu0
  %v224 = vadd.f32 0.0, %v223
  %v225 = vpop.f32.mrb[0].mxu0
  %v226 = vadd.f32 0.0, %v225
  %v227 = vpop.f32.mrb[0].mxu0
  %v228 = vadd.f32 0.0, %v227
  %229 = vmatprep.mubr.bf16.mxu0 0
  %230 = vmatmul.mubr.bf16.gmra.mrb[0].mxu0 %v83
  %v231 = vpop.f32.mrb[0].mxu0
  %v232 = vadd.f32 0.0, %v231
  %v233 = vpop.f32.mrb[0].mxu0
  %v234 = vadd.f32 0.0, %v233
  %v235 = vpop.f32.mrb[0].mxu0
  %v236 = vadd.f32 0.0, %v235
  %v237 = vpop.f32.mrb[0].mxu0
  %v238 = vadd.f32 0.0, %v237
  %239 = vmatprep.mubr.bf16.mxu0 0
  %240 = vmatmul.mubr.bf16.gmra.mrb[0].mxu0 %v84
  %v241 = vpop.f32.mrb[0].mxu0
  %v242 = vadd.f32 0.0, %v241
  %v243 = vpop.f32.mrb[0].mxu0
  %v244 = vadd.f32 0.0, %v243
  %v245 = vpop.f32.mrb[0].mxu0
  %v246 = vadd.f32 0.0, %v245
  %v247 = vpop.f32.mrb[0].mxu0
  %v248 = vadd.f32 0.0, %v247
  %249 = vmatprep.mubr.bf16.mxu0 0
  %250 = vmatmul.mubr.bf16.gmra.mrb[0].mxu0 %v85
  %v251 = vpop.f32.mrb[0].mxu0
  %v252 = vadd.f32 0.0, %v251
  %v253 = vpop.f32.mrb[0].mxu0
  %v254 = vadd.f32 0.0, %v253
  %v255 = vpop.f32.mrb[0].mxu0
  %v256 = vadd.f32 0.0, %v255
  %v257 = vpop.f32.mrb[0].mxu0
  %v258 = vadd.f32 0.0, %v257
  %259 = vmatprep.mubr.bf16.mxu0 0
  %260 = vmatmul.mubr.bf16.gmra.mrb[0].mxu0 %v86
  %v261 = vpop.f32.mrb[0].mxu0
  %v262 = vadd.f32 0.0, %v261
  %v263 = vpop.f32.mrb[0].mxu0
  %v264 = vadd.f32 0.0, %v263
  %v265 = vpop.f32.mrb[0].mxu0
  %v266 = vadd.f32 0.0, %v265
  %v267 = vpop.f32.mrb[0].mxu0
  %v268 = vadd.f32 0.0, %v267
  %269 = vmatprep.mubr.bf16.mxu0 0
  %270 = vmatmul.mubr.bf16.gmra.mrb[0].mxu0 %v87
  %v271 = vpop.f32.mrb[0].mxu0
  %v272 = vadd.f32 0.0, %v271
  %v273 = vpop.f32.mrb[0].mxu0
  %v274 = vadd.f32 0.0, %v273
  %v275 = vpop.f32.mrb[0].mxu0
  %v276 = vadd.f32 0.0, %v275
  %v277 = vpop.f32.mrb[0].mxu0
  %v278 = vadd.f32 0.0, %v277
  %279 = vmatprep.mubr.bf16.mxu0 0
  %280 = vmatmul.mubr.bf16.gmra.mrb[0].mxu0 %v88
  %v281 = vpop.f32.mrb[0].mxu0
  %v282 = vadd.f32 0.0, %v281
  %v283 = vpop.f32.mrb[0].mxu0
  %v284 = vadd.f32 0.0, %v283
  %v285 = vpop.f32.mrb[0].mxu0
  %v286 = vadd.f32 0.0, %v285
  %v287 = vpop.f32.mrb[0].mxu0
  %v288 = vadd.f32 0.0, %v287
  %289 = vdwg.mxu0
  %v290 = vpack.c.bf16 %v216, %v212
  %v291 = vpack.c.bf16 %v226, %v222
  %v292 = vpack.c.bf16 %v236, %v232
  %v293 = vpack.c.bf16 %v246, %v242
  %v294 = vpack.c.bf16 %v256, %v252
  %v295 = vpack.c.bf16 %v266, %v262
  %v296 = vpack.c.bf16 %v276, %v272
  %v297 = vpack.c.bf16 %v286, %v282
  %v306 = vunpack.c.l.b16 %v290
  %v307 = vunpack.c.h.b16 %v290
  %v308 = vunpack.c.l.b16 %v291
  %v309 = vunpack.c.h.b16 %v291
  %v310 = vunpack.c.l.b16 %v292
  %v311 = vunpack.c.h.b16 %v292
  %v312 = vunpack.c.l.b16 %v293
  %v313 = vunpack.c.h.b16 %v293
  %v314 = vunpack.c.l.b16 %v294
  %v315 = vunpack.c.h.b16 %v294
  %v316 = vunpack.c.l.b16 %v295
  %v317 = vunpack.c.h.b16 %v295
  %v318 = vunpack.c.l.b16 %v296
  %v319 = vunpack.c.h.b16 %v296
  %v320 = vunpack.c.l.b16 %v297
  %v321 = vunpack.c.h.b16 %v297
  %v322 = vpack.c.b16 %v306, %v306
  %v323 = vpack.c.b16 %v307, %v307
  %v324 = vpack.c.b16 %v308, %v308
  %v325 = vpack.c.b16 %v309, %v309
  %v326 = vpack.c.b16 %v310, %v310
  %v327 = vpack.c.b16 %v311, %v311
  %v328 = vpack.c.b16 %v312, %v312
  %v329 = vpack.c.b16 %v313, %v313
  %v330 = vpack.c.b16 %v314, %v314
  %v331 = vpack.c.b16 %v315, %v315
  %v332 = vpack.c.b16 %v316, %v316
  %v333 = vpack.c.b16 %v317, %v317
  %v334 = vpack.c.b16 %v318, %v318
  %v335 = vpack.c.b16 %v319, %v319
  %v336 = vpack.c.b16 %v320, %v320
  %v337 = vpack.c.b16 %v321, %v321
  %354 = vst [vmem:[%s3] sm:$0xf] %v322
  %355 = vst [vmem:[%s3 + $0x4] sm:$0xf] %v323
  %356 = vst [vmem:[%s3 + $0x8] sm:$0xf] %v324
  %357 = vst [vmem:[%s3 + $0xc] sm:$0xf] %v325
  %358 = vst [vmem:[%s3 + $0x10] sm:$0xf] %v326
  %359 = vst [vmem:[%s3 + $0x14] sm:$0xf] %v327
  %360 = vst [vmem:[%s3 + $0x18] sm:$0xf] %v328
  %361 = vst [vmem:[%s3 + $0x1c] sm:$0xf] %v329
  %362 = vst [vmem:[%s3 + $0x20] sm:$0xf] %v330
  %363 = vst [vmem:[%s3 + $0x24] sm:$0xf] %v331
  %364 = vst [vmem:[%s3 + $0x28] sm:$0xf] %v332
  %365 = vst [vmem:[%s3 + $0x2c] sm:$0xf] %v333
  %366 = vst [vmem:[%s3 + $0x30] sm:$0xf] %v334
  %367 = vst [vmem:[%s3 + $0x34] sm:$0xf] %v335
  %368 = vst [vmem:[%s3 + $0x38] sm:$0xf] %v336
  %369 = vst [vmem:[%s3 + $0x3c] sm:$0xf] %v337
  %v370 = vld [vmem:[%s2] sm:$0x1]
  %v372 = vlaneseq
  %v373 = vshrl.u32 %v372, 7
  %v374 = vsub.s32 0, %v373
  %v375 = vrot.slane %v370, %v374
  %v377 = vadd.f32 %v214, %v375
  %v378 = vadd.f32 %v218, %v375
  %v379 = vadd.f32 %v224, %v375
  %v380 = vadd.f32 %v228, %v375
  %v381 = vadd.f32 %v234, %v375
  %v382 = vadd.f32 %v238, %v375
  %v383 = vadd.f32 %v244, %v375
  %v384 = vadd.f32 %v248, %v375
  %v385 = vadd.f32 %v254, %v375
  %v386 = vadd.f32 %v258, %v375
  %v387 = vadd.f32 %v264, %v375
  %v388 = vadd.f32 %v268, %v375
  %v389 = vadd.f32 %v274, %v375
  %v390 = vadd.f32 %v278, %v375
  %v391 = vadd.f32 %v284, %v375
  %v392 = vadd.f32 %v288, %v375
  %393 = vst [vmem:[%s4] sm:$0xff] %v377
  %394 = vst [vmem:[%s4 + $0x8] sm:$0xff] %v378
  %395 = vst [vmem:[%s4 + $0x10] sm:$0xff] %v379
  %396 = vst [vmem:[%s4 + $0x18] sm:$0xff] %v380
  %397 = vst [vmem:[%s4 + $0x20] sm:$0xff] %v381
  %398 = vst [vmem:[%s4 + $0x28] sm:$0xff] %v382
  %399 = vst [vmem:[%s4 + $0x30] sm:$0xff] %v383
  %400 = vst [vmem:[%s4 + $0x38] sm:$0xff] %v384
  %401 = vst [vmem:[%s4 + $0x40] sm:$0xff] %v385
  %402 = vst [vmem:[%s4 + $0x48] sm:$0xff] %v386
  %403 = vst [vmem:[%s4 + $0x50] sm:$0xff] %v387
  %404 = vst [vmem:[%s4 + $0x58] sm:$0xff] %v388
  %405 = vst [vmem:[%s4 + $0x60] sm:$0xff] %v389
  %406 = vst [vmem:[%s4 + $0x68] sm:$0xff] %v390
  %407 = vst [vmem:[%s4 + $0x70] sm:$0xff] %v391
  %408 = vst [vmem:[%s4 + $0x78] sm:$0xff] %v392
  // Predicated region
  $region14: #{_forward_padded.4} parent=0 // pred_check
    _
  $region15: #{_forward_padded.4} parent=0 // pred_check_branch
    %410 = sbr.rel (0) target = $region17
  $region16: #{_forward_padded.4} parent=0 // pred_region
    _
  $region17: #{_forward_padded.4} parent=0 // pred_fallthru
    _
  // Predicated region
  $region18: #{_forward_padded.4} parent=0 // pred_check
    _
  $region19: #{_forward_padded.4} parent=0 // pred_check_branch
    %412 = sbr.rel (0) target = $region21
  $region20: #{_forward_padded.4} parent=0 // pred_region
    _
  $region21: #{_forward_padded.4} parent=0 // pred_fallthru
    _
  // Predicated region
  $region22: #{_forward_padded.4} parent=0 // pred_check
    _
  $region23: #{_forward_padded.4} parent=0 // pred_check_branch
    %414 = sbr.rel (0) target = $region25
  $region24: #{_forward_padded.4} parent=0 // pred_region
    _
  $region25: #{_forward_padded.4} parent=0 // pred_fallthru
    _
  // Predicated region
  $region26: #{_forward_padded.4} parent=0 // pred_check
    _
  $region27: #{_forward_padded.4} parent=0 // pred_check_branch
    %416 = sbr.rel (0) target = $region29
  $region28: #{_forward_padded.4} parent=0 // pred_region
    _
  $region29: #{_forward_padded.4} parent=0 // pred_fallthru
    _

// kernel: _forward_padded.5
$region0: #{_forward_padded.5}
  #allocation0 [shape = 'u32[]', space=smem, size = 0x4, offset = 0x4, fixed_abs, tag = 'smem constant byte address 0x4 - core index']
  #allocation1 [shape = 'u32[144,128]{1,0:T(1,128)}', space=vmem, size = 0x12000, scoped, tag = 'internal scratch']
  #allocation2 [shape = 'f32[128,128]{1,0:T(8,128)}', space=vmem, size = 0x10000, scoped, tag = 'scratch operand']
  %s0 = inlined_call_operand.vmem [shape: bf16[128,128], index: 0, kind: input, shape index: {}]
  %s1 = inlined_call_operand.vmem [shape: bf16[128,128], index: 1, kind: input, shape index: {}]
  %s2 = inlined_call_operand.vmem [shape: f32[128,128], index: 2, kind: input, shape index: {}]
  %s3 = inlined_call_operand.vmem [shape: f32[128,1], index: 3, kind: input, shape index: {}]
  %s4 = inlined_call_operand.vmem [shape: bf16[128,128], index: 4, kind: output, shape index: {}]
  %s5 = sld [smem:[#allocation0]]
  $region34: #{_forward_padded.5} parent=0
    _
  %s7 = ssub.s32 1, %s5
  %s8 = scalar_select 0, %s7, %s5
  // Predicated region
  $region2: #{_forward_padded.5} parent=0 // pred_check
    _
  $region3: #{_forward_padded.5} parent=0 // pred_check_branch
    %10 = sbr.rel (0) target = $region5
  $region4: #{_forward_padded.5} parent=0 // pred_region
    _
  $region5: #{_forward_padded.5} parent=0 // pred_fallthru
    _
  // Predicated region
  $region6: #{_forward_padded.5} parent=0 // pred_check
    _
  $region7: #{_forward_padded.5} parent=0 // pred_check_branch
    %12 = sbr.rel (0) target = $region9
  $region8: #{_forward_padded.5} parent=0 // pred_region
    _
  $region9: #{_forward_padded.5} parent=0 // pred_fallthru
    _
  // Predicated region
  $region10: #{_forward_padded.5} parent=0 // pred_check
    _
  $region11: #{_forward_padded.5} parent=0 // pred_check_branch
    %14 = sbr.rel (0) target = $region13
  $region12: #{_forward_padded.5} parent=0 // pred_region
    _
  $region13: #{_forward_padded.5} parent=0 // pred_fallthru
    _
  // Predicated region
  $region14: #{_forward_padded.5} parent=0 // pred_check
    _
  $region15: #{_forward_padded.5} parent=0 // pred_check_branch
    %16 = sbr.rel (0) target = $region17
  $region16: #{_forward_padded.5} parent=0 // pred_region
    _
  $region17: #{_forward_padded.5} parent=0 // pred_fallthru
    _
  %p18 = scmp.eq.s32.totalorder 0, 0
  // Predicated region
  $region18: #{_forward_padded.5} parent=0 // pred_check
    %p19 = pneg %p18
  $region19: #{_forward_padded.5} parent=0 // pred_check_branch
    %21 = sbr.rel (%p19) target = $region21
  $region20: #{_forward_padded.5} parent=0 // pred_region
    %22 = vst [vmem:[#allocation2] sm:$0xff] 0.0
    %23 = vst [vmem:[#allocation2 + $0x8] sm:$0xff] 0.0
    %24 = vst [vmem:[#allocation2 + $0x10] sm:$0xff] 0.0
    %25 = vst [vmem:[#allocation2 + $0x18] sm:$0xff] 0.0
    %26 = vst [vmem:[#allocation2 + $0x20] sm:$0xff] 0.0
    %27 = vst [vmem:[#allocation2 + $0x28] sm:$0xff] 0.0
    %28 = vst [vmem:[#allocation2 + $0x30] sm:$0xff] 0.0
    %29 = vst [vmem:[#allocation2 + $0x38] sm:$0xff] 0.0
    %30 = vst [vmem:[#allocation2 + $0x40] sm:$0xff] 0.0
    %31 = vst [vmem:[#allocation2 + $0x48] sm:$0xff] 0.0
    %32 = vst [vmem:[#allocation2 + $0x50] sm:$0xff] 0.0
    %33 = vst [vmem:[#allocation2 + $0x58] sm:$0xff] 0.0
    %34 = vst [vmem:[#allocation2 + $0x60] sm:$0xff] 0.0
    %35 = vst [vmem:[#allocation2 + $0x68] sm:$0xff] 0.0
    %36 = vst [vmem:[#allocation2 + $0x70] sm:$0xff] 0.0
    %37 = vst [vmem:[#allocation2 + $0x78] sm:$0xff] 0.0
  $region21: #{_forward_padded.5} parent=0 // pred_fallthru
    _
  %v38 = vld [vmem:[#allocation2] sm:$0xff]
  %v39 = vld [vmem:[#allocation2 + $0x8] sm:$0xff]
  %v40 = vld [vmem:[#allocation2 + $0x10] sm:$0xff]
  %v41 = vld [vmem:[#allocation2 + $0x18] sm:$0xff]
  %v42 = vld [vmem:[#allocation2 + $0x20] sm:$0xff]
  %v43 = vld [vmem:[#allocation2 + $0x28] sm:$0xff]
  %v44 = vld [vmem:[#allocation2 + $0x30] sm:$0xff]
  %v45 = vld [vmem:[#allocation2 + $0x38] sm:$0xff]
  %v46 = vld [vmem:[#allocation2 + $0x40] sm:$0xff]
  %v47 = vld [vmem:[#allocation2 + $0x48] sm:$0xff]
  %v48 = vld [vmem:[#allocation2 + $0x50] sm:$0xff]
  %v49 = vld [vmem:[#allocation2 + $0x58] sm:$0xff]
  %v50 = vld [vmem:[#allocation2 + $0x60] sm:$0xff]
  %v51 = vld [vmem:[#allocation2 + $0x68] sm:$0xff]
  %v52 = vld [vmem:[#allocation2 + $0x70] sm:$0xff]
  %v53 = vld [vmem:[#allocation2 + $0x78] sm:$0xff]
  %v54 = vld [vmem:[%s0] sm:$0xf]
  %v55 = vld [vmem:[%s0 + $0x4] sm:$0xf]
  %v56 = vld [vmem:[%s0 + $0x8] sm:$0xf]
  %v57 = vld [vmem:[%s0 + $0xc] sm:$0xf]
  %v58 = vld [vmem:[%s0 + $0x10] sm:$0xf]
  %v59 = vld [vmem:[%s0 + $0x14] sm:$0xf]
  %v60 = vld [vmem:[%s0 + $0x18] sm:$0xf]
  %v61 = vld [vmem:[%s0 + $0x1c] sm:$0xf]
  %v62 = vld [vmem:[%s0 + $0x20] sm:$0xf]
  %v63 = vld [vmem:[%s0 + $0x24] sm:$0xf]
  %v64 = vld [vmem:[%s0 + $0x28] sm:$0xf]
  %v65 = vld [vmem:[%s0 + $0x2c] sm:$0xf]
  %v66 = vld [vmem:[%s0 + $0x30] sm:$0xf]
  %v67 = vld [vmem:[%s0 + $0x34] sm:$0xf]
  %v68 = vld [vmem:[%s0 + $0x38] sm:$0xf]
  %v69 = vld [vmem:[%s0 + $0x3c] sm:$0xf]
  %v70 = vld [vmem:[%s1] sm:$0xf]
  %v71 = vld [vmem:[%s1 + $0x4] sm:$0xf]
  %v72 = vld [vmem:[%s1 + $0x8] sm:$0xf]
  %v73 = vld [vmem:[%s1 + $0xc] sm:$0xf]
  %v74 = vld [vmem:[%s1 + $0x10] sm:$0xf]
  %v75 = vld [vmem:[%s1 + $0x14] sm:$0xf]
  %v76 = vld [vmem:[%s1 + $0x18] sm:$0xf]
  %v77 = vld [vmem:[%s1 + $0x1c] sm:$0xf]
  %v78 = vld [vmem:[%s1 + $0x20] sm:$0xf]
  %v79 = vld [vmem:[%s1 + $0x24] sm:$0xf]
  %v80 = vld [vmem:[%s1 + $0x28] sm:$0xf]
  %v81 = vld [vmem:[%s1 + $0x2c] sm:$0xf]
  %v82 = vld [vmem:[%s1 + $0x30] sm:$0xf]
  %v83 = vld [vmem:[%s1 + $0x34] sm:$0xf]
  %v84 = vld [vmem:[%s1 + $0x38] sm:$0xf]
  %v85 = vld [vmem:[%s1 + $0x3c] sm:$0xf]
  %v102 = vunpack.c.l.b16 %v54
  %v103 = vunpack.c.l.b16 %v55
  %v104 = vunpack.c.l.b16 %v56
  %v105 = vunpack.c.l.b16 %v57
  %v106 = vunpack.c.l.b16 %v58
  %v107 = vunpack.c.l.b16 %v59
  %v108 = vunpack.c.l.b16 %v60
  %v109 = vunpack.c.l.b16 %v61
  %v110 = vunpack.c.l.b16 %v62
  %v111 = vunpack.c.l.b16 %v63
  %v112 = vunpack.c.l.b16 %v64
  %v113 = vunpack.c.l.b16 %v65
  %v114 = vunpack.c.l.b16 %v66
  %v115 = vunpack.c.l.b16 %v67
  %v116 = vunpack.c.l.b16 %v68
  %v117 = vunpack.c.l.b16 %v69
  %v118 = vpack.c.b16 %v103, %v102
  %v119 = vpack.c.b16 %v105, %v104
  %v120 = vpack.c.b16 %v107, %v106
  %v121 = vpack.c.b16 %v109, %v108
  %v122 = vpack.c.b16 %v111, %v110
  %v123 = vpack.c.b16 %v113, %v112
  %v124 = vpack.c.b16 %v115, %v114
  %v125 = vpack.c.b16 %v117, %v116
  %v150 = vunpack.c.l.b16 %v70
  %v151 = vunpack.c.l.b16 %v71
  %v152 = vunpack.c.l.b16 %v72
  %v153 = vunpack.c.l.b16 %v73
  %v154 = vunpack.c.l.b16 %v74
  %v155 = vunpack.c.l.b16 %v75
  %v156 = vunpack.c.l.b16 %v76
  %v157 = vunpack.c.l.b16 %v77
  %v158 = vunpack.c.l.b16 %v78
  %v159 = vunpack.c.l.b16 %v79
  %v160 = vunpack.c.l.b16 %v80
  %v161 = vunpack.c.l.b16 %v81
  %v162 = vunpack.c.l.b16 %v82
  %v163 = vunpack.c.l.b16 %v83
  %v164 = vunpack.c.l.b16 %v84
  %v165 = vunpack.c.l.b16 %v85
  %v166 = vpack.c.b16 %v151, %v150
  %v167 = vpack.c.b16 %v153, %v152
  %v168 = vpack.c.b16 %v155, %v154
  %v169 = vpack.c.b16 %v157, %v156
  %v170 = vpack.c.b16 %v159, %v158
  %v171 = vpack.c.b16 %v161, %v160
  %v172 = vpack.c.b16 %v163, %v162
  %v173 = vpack.c.b16 %v165, %v164
  %182 = vmatprep.subr.bf16.mxu0 0
  %183 = vmatpush1.bf16.msra.mxu0 %v166
  %184 = vmatprep.subr.bf16.mxu0 0
  %185 = vmatpush1.bf16.msra.mxu0 %v167
  %186 = vmatprep.subr.bf16.mxu0 0
  %187 = vmatpush1.bf16.msra.mxu0 %v168
  %188 = vmatprep.subr.bf16.mxu0 0
  %189 = vmatpush1.bf16.msra.mxu0 %v169
  %190 = vmatprep.subr.bf16.mxu0 0
  %191 = vmatpush1.bf16.msra.mxu0 %v170
  %192 = vmatprep.subr.bf16.mxu0 0
  %193 = vmatpush1.bf16.msra.mxu0 %v171
  %194 = vmatprep.subr.bf16.mxu0 0
  %195 = vmatpush1.bf16.msra.mxu0 %v172
  %196 = vmatprep.subr.bf16.mxu0 0
  %197 = vmatpush1.bf16.msra.mxu0 %v173
  %198 = vmatprep.subr.bf16.mxu0 0
  %199 = vmatpush1.bf16.msra.mxu0 0
  %200 = vmatprep.subr.bf16.mxu0 0
  %201 = vmatpush1.bf16.msra.mxu0 0
  %202 = vmatprep.subr.bf16.mxu0 0
  %203 = vmatpush1.bf16.msra.mxu0 0
  %204 = vmatprep.subr.bf16.mxu0 0
  %205 = vmatpush1.bf16.msra.mxu0 0
  %206 = vmatprep.subr.bf16.mxu0 0
  %207 = vmatpush1.bf16.msra.mxu0 0
  %208 = vmatprep.subr.bf16.mxu0 0
  %209 = vmatpush1.bf16.msra.mxu0 0
  %210 = vmatprep.subr.bf16.mxu0 0
  %211 = vmatpush1.bf16.msra.mxu0 0
  %212 = vmatprep.subr.bf16.mxu0 0
  %213 = vmatpush1.bf16.msra.mxu0 0
  %214 = vmatprep.mubr.bf16.mxu0 0
  %215 = vmatmul.mubr.bf16.gmra.mrb[0].mxu0 %v118
  %v216 = vpop.f32.mrb[0].mxu0
  %v217 = vadd.f32 0.0, %v216
  %v218 = vpop.f32.mrb[0].mxu0
  %v219 = vpop.f32.mrb[0].mxu0
  %v220 = vadd.f32 0.0, %v219
  %v221 = vpop.f32.mrb[0].mxu0
  %222 = vmatprep.mubr.bf16.mxu0 0
  %223 = vmatmul.mubr.bf16.gmra.mrb[0].mxu0 %v119
  %v224 = vpop.f32.mrb[0].mxu0
  %v225 = vadd.f32 0.0, %v224
  %v226 = vpop.f32.mrb[0].mxu0
  %v227 = vpop.f32.mrb[0].mxu0
  %v228 = vadd.f32 0.0, %v227
  %v229 = vpop.f32.mrb[0].mxu0
  %230 = vmatprep.mubr.bf16.mxu0 0
  %231 = vmatmul.mubr.bf16.gmra.mrb[0].mxu0 %v120
  %v232 = vpop.f32.mrb[0].mxu0
  %v233 = vadd.f32 0.0, %v232
  %v234 = vpop.f32.mrb[0].mxu0
  %v235 = vpop.f32.mrb[0].mxu0
  %v236 = vadd.f32 0.0, %v235
  %v237 = vpop.f32.mrb[0].mxu0
  %238 = vmatprep.mubr.bf16.mxu0 0
  %239 = vmatmul.mubr.bf16.gmra.mrb[0].mxu0 %v121
  %v240 = vpop.f32.mrb[0].mxu0
  %v241 = vadd.f32 0.0, %v240
  %v242 = vpop.f32.mrb[0].mxu0
  %v243 = vpop.f32.mrb[0].mxu0
  %v244 = vadd.f32 0.0, %v243
  %v245 = vpop.f32.mrb[0].mxu0
  %246 = vmatprep.mubr.bf16.mxu0 0
  %247 = vmatmul.mubr.bf16.gmra.mrb[0].mxu0 %v122
  %v248 = vpop.f32.mrb[0].mxu0
  %v249 = vadd.f32 0.0, %v248
  %v250 = vpop.f32.mrb[0].mxu0
  %v251 = vpop.f32.mrb[0].mxu0
  %v252 = vadd.f32 0.0, %v251
  %v253 = vpop.f32.mrb[0].mxu0
  %254 = vmatprep.mubr.bf16.mxu0 0
  %255 = vmatmul.mubr.bf16.gmra.mrb[0].mxu0 %v123
  %v256 = vpop.f32.mrb[0].mxu0
  %v257 = vadd.f32 0.0, %v256
  %v258 = vpop.f32.mrb[0].mxu0
  %v259 = vpop.f32.mrb[0].mxu0
  %v260 = vadd.f32 0.0, %v259
  %v261 = vpop.f32.mrb[0].mxu0
  %262 = vmatprep.mubr.bf16.mxu0 0
  %263 = vmatmul.mubr.bf16.gmra.mrb[0].mxu0 %v124
  %v264 = vpop.f32.mrb[0].mxu0
  %v265 = vadd.f32 0.0, %v264
  %v266 = vpop.f32.mrb[0].mxu0
  %v267 = vpop.f32.mrb[0].mxu0
  %v268 = vadd.f32 0.0, %v267
  %v269 = vpop.f32.mrb[0].mxu0
  %270 = vmatprep.mubr.bf16.mxu0 0
  %271 = vmatmul.mubr.bf16.gmra.mrb[0].mxu0 %v125
  %v272 = vpop.f32.mrb[0].mxu0
  %v273 = vadd.f32 0.0, %v272
  %v274 = vpop.f32.mrb[0].mxu0
  %v275 = vpop.f32.mrb[0].mxu0
  %v276 = vadd.f32 0.0, %v275
  %v277 = vpop.f32.mrb[0].mxu0
  %278 = vdwg.mxu0
  %v279 = vadd.f32 %v38, %v217
  %v280 = vadd.f32 %v39, %v220
  %v281 = vadd.f32 %v40, %v225
  %v282 = vadd.f32 %v41, %v228
  %v283 = vadd.f32 %v42, %v233
  %v284 = vadd.f32 %v43, %v236
  %v285 = vadd.f32 %v44, %v241
  %v286 = vadd.f32 %v45, %v244
  %v287 = vadd.f32 %v46, %v249
  %v288 = vadd.f32 %v47, %v252
  %v289 = vadd.f32 %v48, %v257
  %v290 = vadd.f32 %v49, %v260
  %v291 = vadd.f32 %v50, %v265
  %v292 = vadd.f32 %v51, %v268
  %v293 = vadd.f32 %v52, %v273
  %v294 = vadd.f32 %v53, %v276
  %295 = vst [vmem:[#allocation2] sm:$0xff] %v279
  %296 = vst [vmem:[#allocation2 + $0x8] sm:$0xff] %v280
  %297 = vst [vmem:[#allocation2 + $0x10] sm:$0xff] %v281
  %298 = vst [vmem:[#allocation2 + $0x18] sm:$0xff] %v282
  %299 = vst [vmem:[#allocation2 + $0x20] sm:$0xff] %v283
  %300 = vst [vmem:[#allocation2 + $0x28] sm:$0xff] %v284
  %301 = vst [vmem:[#allocation2 + $0x30] sm:$0xff] %v285
  %302 = vst [vmem:[#allocation2 + $0x38] sm:$0xff] %v286
  %303 = vst [vmem:[#allocation2 + $0x40] sm:$0xff] %v287
  %304 = vst [vmem:[#allocation2 + $0x48] sm:$0xff] %v288
  %305 = vst [vmem:[#allocation2 + $0x50] sm:$0xff] %v289
  %306 = vst [vmem:[#allocation2 + $0x58] sm:$0xff] %v290
  %307 = vst [vmem:[#allocation2 + $0x60] sm:$0xff] %v291
  %308 = vst [vmem:[#allocation2 + $0x68] sm:$0xff] %v292
  %309 = vst [vmem:[#allocation2 + $0x70] sm:$0xff] %v293
  %310 = vst [vmem:[#allocation2 + $0x78] sm:$0xff] %v294
  // Predicated region
  $region22: #{_forward_padded.5} parent=0 // pred_check
    %p311 = pneg %p18
  $region23: #{_forward_padded.5} parent=0 // pred_check_branch
    %313 = sbr.rel (%p311) target = $region25
  $region24: #{_forward_padded.5} parent=0 // pred_region
    %v314 = vld [vmem:[#allocation2] sm:$0xff]
    %v315 = vld [vmem:[#allocation2 + $0x8] sm:$0xff]
    %v316 = vld [vmem:[#allocation2 + $0x10] sm:$0xff]
    %v317 = vld [vmem:[#allocation2 + $0x18] sm:$0xff]
    %v318 = vld [vmem:[#allocation2 + $0x20] sm:$0xff]
    %v319 = vld [vmem:[#allocation2 + $0x28] sm:$0xff]
    %v320 = vld [vmem:[#allocation2 + $0x30] sm:$0xff]
    %v321 = vld [vmem:[#allocation2 + $0x38] sm:$0xff]
    %v322 = vld [vmem:[#allocation2 + $0x40] sm:$0xff]
    %v323 = vld [vmem:[#allocation2 + $0x48] sm:$0xff]
    %v324 = vld [vmem:[#allocation2 + $0x50] sm:$0xff]
    %v325 = vld [vmem:[#allocation2 + $0x58] sm:$0xff]
    %v326 = vld [vmem:[#allocation2 + $0x60] sm:$0xff]
    %v327 = vld [vmem:[#allocation2 + $0x68] sm:$0xff]
    %v328 = vld [vmem:[#allocation2 + $0x70] sm:$0xff]
    %v329 = vld [vmem:[#allocation2 + $0x78] sm:$0xff]
    %v330 = vld [vmem:[%s3] sm:$0xff]
    %v331 = vld [vmem:[%s3 + $0x8] sm:$0xff]
    %v332 = vld [vmem:[%s3 + $0x10] sm:$0xff]
    %v333 = vld [vmem:[%s3 + $0x18] sm:$0xff]
    %v334 = vld [vmem:[%s3 + $0x20] sm:$0xff]
    %v335 = vld [vmem:[%s3 + $0x28] sm:$0xff]
    %v336 = vld [vmem:[%s3 + $0x30] sm:$0xff]
    %v337 = vld [vmem:[%s3 + $0x38] sm:$0xff]
    %v338 = vld [vmem:[%s3 + $0x40] sm:$0xff]
    %v339 = vld [vmem:[%s3 + $0x48] sm:$0xff]
    %v340 = vld [vmem:[%s3 + $0x50] sm:$0xff]
    %v341 = vld [vmem:[%s3 + $0x58] sm:$0xff]
    %v342 = vld [vmem:[%s3 + $0x60] sm:$0xff]
    %v343 = vld [vmem:[%s3 + $0x68] sm:$0xff]
    %v344 = vld [vmem:[%s3 + $0x70] sm:$0xff]
    %v345 = vld [vmem:[%s3 + $0x78] sm:$0xff]
    %347 = vset.pattern.permute.xlu0 0
    %348 = vperm.xlu0 %347, %v330
    %v349 = vpop.permute.xlu0 %348
    %352 = vset.pattern.permute.xlu0 0
    %353 = vperm.xlu0 %352, %v331
    %v354 = vpop.permute.xlu0 %353
    %357 = vset.pattern.permute.xlu0 0
    %358 = vperm.xlu0 %357, %v332
    %v359 = vpop.permute.xlu0 %358
    %362 = vset.pattern.permute.xlu0 0
    %363 = vperm.xlu0 %362, %v333
    %v364 = vpop.permute.xlu0 %363
    %367 = vset.pattern.permute.xlu0 0
    %368 = vperm.xlu0 %367, %v334
    %v369 = vpop.permute.xlu0 %368
    %372 = vset.pattern.permute.xlu0 0
    %373 = vperm.xlu0 %372, %v335
    %v374 = vpop.permute.xlu0 %373
    %377 = vset.pattern.permute.xlu0 0
    %378 = vperm.xlu0 %377, %v336
    %v379 = vpop.permute.xlu0 %378
    %382 = vset.pattern.permute.xlu0 0
    %383 = vperm.xlu0 %382, %v337
    %v384 = vpop.permute.xlu0 %383
    %387 = vset.pattern.permute.xlu0 0
    %388 = vperm.xlu0 %387, %v338
    %v389 = vpop.permute.xlu0 %388
    %392 = vset.pattern.permute.xlu0 0
    %393 = vperm.xlu0 %392, %v339
    %v394 = vpop.permute.xlu0 %393
    %397 = vset.pattern.permute.xlu0 0
    %398 = vperm.xlu0 %397, %v340
    %v399 = vpop.permute.xlu0 %398
    %402 = vset.pattern.permute.xlu0 0
    %403 = vperm.xlu0 %402, %v341
    %v404 = vpop.permute.xlu0 %403
    %407 = vset.pattern.permute.xlu0 0
    %408 = vperm.xlu0 %407, %v342
    %v409 = vpop.permute.xlu0 %408
    %412 = vset.pattern.permute.xlu0 0
    %413 = vperm.xlu0 %412, %v343
    %v414 = vpop.permute.xlu0 %413
    %417 = vset.pattern.permute.xlu0 0
    %418 = vperm.xlu0 %417, %v344
    %v419 = vpop.permute.xlu0 %418
    %422 = vset.pattern.permute.xlu0 0
    %423 = vperm.xlu0 %422, %v345
    %v424 = vpop.permute.xlu0 %423
    %v426 = vmul.f32 %v314, %v349
    %v427 = vmul.f32 %v315, %v354
    %v428 = vmul.f32 %v316, %v359
    %v429 = vmul.f32 %v317, %v364
    %v430 = vmul.f32 %v318, %v369
    %v431 = vmul.f32 %v319, %v374
    %v432 = vmul.f32 %v320, %v379
    %v433 = vmul.f32 %v321, %v384
    %v434 = vmul.f32 %v322, %v389
    %v435 = vmul.f32 %v323, %v394
    %v436 = vmul.f32 %v324, %v399
    %v437 = vmul.f32 %v325, %v404
    %v438 = vmul.f32 %v326, %v409
    %v439 = vmul.f32 %v327, %v414
    %v440 = vmul.f32 %v328, %v419
    %v441 = vmul.f32 %v329, %v424
    %v442 = vld [vmem:[%s2] sm:$0xff]
    %v443 = vld [vmem:[%s2 + $0x8] sm:$0xff]
    %v444 = vld [vmem:[%s2 + $0x10] sm:$0xff]
    %v445 = vld [vmem:[%s2 + $0x18] sm:$0xff]
    %v446 = vld [vmem:[%s2 + $0x20] sm:$0xff]
    %v447 = vld [vmem:[%s2 + $0x28] sm:$0xff]
    %v448 = vld [vmem:[%s2 + $0x30] sm:$0xff]
    %v449 = vld [vmem:[%s2 + $0x38] sm:$0xff]
    %v450 = vld [vmem:[%s2 + $0x40] sm:$0xff]
    %v451 = vld [vmem:[%s2 + $0x48] sm:$0xff]
    %v452 = vld [vmem:[%s2 + $0x50] sm:$0xff]
    %v453 = vld [vmem:[%s2 + $0x58] sm:$0xff]
    %v454 = vld [vmem:[%s2 + $0x60] sm:$0xff]
    %v455 = vld [vmem:[%s2 + $0x68] sm:$0xff]
    %v456 = vld [vmem:[%s2 + $0x70] sm:$0xff]
    %v457 = vld [vmem:[%s2 + $0x78] sm:$0xff]
    %v458 = vadd.f32 %v426, %v442
    %v459 = vadd.f32 %v427, %v443
    %v460 = vadd.f32 %v428, %v444
    %v461 = vadd.f32 %v429, %v445
    %v462 = vadd.f32 %v430, %v446
    %v463 = vadd.f32 %v431, %v447
    %v464 = vadd.f32 %v432, %v448
    %v465 = vadd.f32 %v433, %v449
    %v466 = vadd.f32 %v434, %v450
    %v467 = vadd.f32 %v435, %v451
    %v468 = vadd.f32 %v436, %v452
    %v469 = vadd.f32 %v437, %v453
    %v470 = vadd.f32 %v438, %v454
    %v471 = vadd.f32 %v439, %v455
    %v472 = vadd.f32 %v440, %v456
    %v473 = vadd.f32 %v441, %v457
    %v474 = vmax.f32 %v458, 0.0
    %v475 = vmax.f32 %v459, 0.0
    %v476 = vmax.f32 %v460, 0.0
    %v477 = vmax.f32 %v461, 0.0
    %v478 = vmax.f32 %v462, 0.0
    %v479 = vmax.f32 %v463, 0.0
    %v480 = vmax.f32 %v464, 0.0
    %v481 = vmax.f32 %v465, 0.0
    %v482 = vmax.f32 %v466, 0.0
    %v483 = vmax.f32 %v467, 0.0
    %v484 = vmax.f32 %v468, 0.0
    %v485 = vmax.f32 %v469, 0.0
    %v486 = vmax.f32 %v470, 0.0
    %v487 = vmax.f32 %v471, 0.0
    %v488 = vmax.f32 %v472, 0.0
    %v489 = vmax.f32 %v473, 0.0
    %v490 = vpack.c.bf16 %v475, %v474
    %v491 = vpack.c.bf16 %v477, %v476
    %v492 = vpack.c.bf16 %v479, %v478
    %v493 = vpack.c.bf16 %v481, %v480
    %v494 = vpack.c.bf16 %v483, %v482
    %v495 = vpack.c.bf16 %v485, %v484
    %v496 = vpack.c.bf16 %v487, %v486
    %v497 = vpack.c.bf16 %v489, %v488
    %v506 = vunpack.c.l.b16 %v490
    %v507 = vunpack.c.h.b16 %v490
    %v508 = vunpack.c.l.b16 %v491
    %v509 = vunpack.c.h.b16 %v491
    %v510 = vunpack.c.l.b16 %v492
    %v511 = vunpack.c.h.b16 %v492
    %v512 = vunpack.c.l.b16 %v493
    %v513 = vunpack.c.h.b16 %v493
    %v514 = vunpack.c.l.b16 %v494
    %v515 = vunpack.c.h.b16 %v494
    %v516 = vunpack.c.l.b16 %v495
    %v517 = vunpack.c.h.b16 %v495
    %v518 = vunpack.c.l.b16 %v496
    %v519 = vunpack.c.h.b16 %v496
    %v520 = vunpack.c.l.b16 %v497
    %v521 = vunpack.c.h.b16 %v497
    %v522 = vpack.c.b16 %v506, %v506
    %v523 = vpack.c.b16 %v507, %v507
    %v524 = vpack.c.b16 %v508, %v508
    %v525 = vpack.c.b16 %v509, %v509
    %v526 = vpack.c.b16 %v510, %v510
    %v527 = vpack.c.b16 %v511, %v511
    %v528 = vpack.c.b16 %v512, %v512
    %v529 = vpack.c.b16 %v513, %v513
    %v530 = vpack.c.b16 %v514, %v514
    %v531 = vpack.c.b16 %v515, %v515
    %v532 = vpack.c.b16 %v516, %v516
    %v533 = vpack.c.b16 %v517, %v517
    %v534 = vpack.c.b16 %v518, %v518
    %v535 = vpack.c.b16 %v519, %v519
    %v536 = vpack.c.b16 %v520, %v520
    %v537 = vpack.c.b16 %v521, %v521
    %554 = vst [vmem:[%s4] sm:$0xf] %v522
    %555 = vst [vmem:[%s4 + $0x4] sm:$0xf] %v523
    %556 = vst [vmem:[%s4 + $0x8] sm:$0xf] %v524
    %557 = vst [vmem:[%s4 + $0xc] sm:$0xf] %v525
    %558 = vst [vmem:[%s4 + $0x10] sm:$0xf] %v526
    %559 = vst [vmem:[%s4 + $0x14] sm:$0xf] %v527
    %560 = vst [vmem:[%s4 + $0x18] sm:$0xf] %v528
    %561 = vst [vmem:[%s4 + $0x1c] sm:$0xf] %v529
    %562 = vst [vmem:[%s4 + $0x20] sm:$0xf] %v530
    %563 = vst [vmem:[%s4 + $0x24] sm:$0xf] %v531
    %564 = vst [vmem:[%s4 + $0x28] sm:$0xf] %v532
    %565 = vst [vmem:[%s4 + $0x2c] sm:$0xf] %v533
    %566 = vst [vmem:[%s4 + $0x30] sm:$0xf] %v534
    %567 = vst [vmem:[%s4 + $0x34] sm:$0xf] %v535
    %568 = vst [vmem:[%s4 + $0x38] sm:$0xf] %v536
    %569 = vst [vmem:[%s4 + $0x3c] sm:$0xf] %v537
  $region25: #{_forward_padded.5} parent=0 // pred_fallthru
    _
  // Predicated region
  $region26: #{_forward_padded.5} parent=0 // pred_check
    _
  $region27: #{_forward_padded.5} parent=0 // pred_check_branch
    %571 = sbr.rel (0) target = $region29
  $region28: #{_forward_padded.5} parent=0 // pred_region
    _
  $region29: #{_forward_padded.5} parent=0 // pred_fallthru
    _
  // Predicated region
  $region30: #{_forward_padded.5} parent=0 // pred_check
    _
  $region31: #{_forward_padded.5} parent=0 // pred_check_branch
    %573 = sbr.rel (0) target = $region33
  $region32: #{_forward_padded.5} parent=0 // pred_region
    _
  $region33: #{_forward_padded.5} parent=0 // pred_fallthru
    _

// kernel: _forward_padded.7
$region0: #{_forward_padded.7}
  #allocation0 [shape = 'u32[]', space=smem, size = 0x4, offset = 0x4, fixed_abs, tag = 'smem constant byte address 0x4 - core index']
  #allocation1 [shape = 'u32[144,128]{1,0:T(1,128)}', space=vmem, size = 0x12000, scoped, tag = 'internal scratch']
  #allocation2 [shape = 'f32[128,128]{1,0:T(8,128)}', space=vmem, size = 0x10000, scoped, tag = 'scratch operand']
  %s0 = inlined_call_operand.vmem [shape: bf16[128,128], index: 0, kind: input, shape index: {}]
  %s1 = inlined_call_operand.vmem [shape: bf16[128,128], index: 1, kind: input, shape index: {}]
  %s2 = inlined_call_operand.vmem [shape: f32[128,128], index: 2, kind: input, shape index: {}]
  %s3 = inlined_call_operand.vmem [shape: f32[128,1], index: 3, kind: input, shape index: {}]
  %s4 = inlined_call_operand.vmem [shape: f32[128,128], index: 4, kind: output, shape index: {}]
  %s5 = sld [smem:[#allocation0]]
  $region34: #{_forward_padded.7} parent=0
    _
  %s7 = ssub.s32 1, %s5
  %s8 = scalar_select 0, %s7, %s5
  // Predicated region
  $region2: #{_forward_padded.7} parent=0 // pred_check
    _
  $region3: #{_forward_padded.7} parent=0 // pred_check_branch
    %10 = sbr.rel (0) target = $region5
  $region4: #{_forward_padded.7} parent=0 // pred_region
    _
  $region5: #{_forward_padded.7} parent=0 // pred_fallthru
    _
  // Predicated region
  $region6: #{_forward_padded.7} parent=0 // pred_check
    _
  $region7: #{_forward_padded.7} parent=0 // pred_check_branch
    %12 = sbr.rel (0) target = $region9
  $region8: #{_forward_padded.7} parent=0 // pred_region
    _
  $region9: #{_forward_padded.7} parent=0 // pred_fallthru
    _
  // Predicated region
  $region10: #{_forward_padded.7} parent=0 // pred_check
    _
  $region11: #{_forward_padded.7} parent=0 // pred_check_branch
    %14 = sbr.rel (0) target = $region13
  $region12: #{_forward_padded.7} parent=0 // pred_region
    _
  $region13: #{_forward_padded.7} parent=0 // pred_fallthru
    _
  // Predicated region
  $region14: #{_forward_padded.7} parent=0 // pred_check
    _
  $region15: #{_forward_padded.7} parent=0 // pred_check_branch
    %16 = sbr.rel (0) target = $region17
  $region16: #{_forward_padded.7} parent=0 // pred_region
    _
  $region17: #{_forward_padded.7} parent=0 // pred_fallthru
    _
  %p18 = scmp.eq.s32.totalorder 0, 0
  // Predicated region
  $region18: #{_forward_padded.7} parent=0 // pred_check
    %p19 = pneg %p18
  $region19: #{_forward_padded.7} parent=0 // pred_check_branch
    %21 = sbr.rel (%p19) target = $region21
  $region20: #{_forward_padded.7} parent=0 // pred_region
    %22 = vst [vmem:[#allocation2] sm:$0xff] 0.0
    %23 = vst [vmem:[#allocation2 + $0x8] sm:$0xff] 0.0
    %24 = vst [vmem:[#allocation2 + $0x10] sm:$0xff] 0.0
    %25 = vst [vmem:[#allocation2 + $0x18] sm:$0xff] 0.0
    %26 = vst [vmem:[#allocation2 + $0x20] sm:$0xff] 0.0
    %27 = vst [vmem:[#allocation2 + $0x28] sm:$0xff] 0.0
    %28 = vst [vmem:[#allocation2 + $0x30] sm:$0xff] 0.0
    %29 = vst [vmem:[#allocation2 + $0x38] sm:$0xff] 0.0
    %30 = vst [vmem:[#allocation2 + $0x40] sm:$0xff] 0.0
    %31 = vst [vmem:[#allocation2 + $0x48] sm:$0xff] 0.0
    %32 = vst [vmem:[#allocation2 + $0x50] sm:$0xff] 0.0
    %33 = vst [vmem:[#allocation2 + $0x58] sm:$0xff] 0.0
    %34 = vst [vmem:[#allocation2 + $0x60] sm:$0xff] 0.0
    %35 = vst [vmem:[#allocation2 + $0x68] sm:$0xff] 0.0
    %36 = vst [vmem:[#allocation2 + $0x70] sm:$0xff] 0.0
    %37 = vst [vmem:[#allocation2 + $0x78] sm:$0xff] 0.0
  $region21: #{_forward_padded.7} parent=0 // pred_fallthru
    _
  %v38 = vld [vmem:[#allocation2] sm:$0xff]
  %v39 = vld [vmem:[#allocation2 + $0x8] sm:$0xff]
  %v40 = vld [vmem:[#allocation2 + $0x10] sm:$0xff]
  %v41 = vld [vmem:[#allocation2 + $0x18] sm:$0xff]
  %v42 = vld [vmem:[#allocation2 + $0x20] sm:$0xff]
  %v43 = vld [vmem:[#allocation2 + $0x28] sm:$0xff]
  %v44 = vld [vmem:[#allocation2 + $0x30] sm:$0xff]
  %v45 = vld [vmem:[#allocation2 + $0x38] sm:$0xff]
  %v46 = vld [vmem:[#allocation2 + $0x40] sm:$0xff]
  %v47 = vld [vmem:[#allocation2 + $0x48] sm:$0xff]
  %v48 = vld [vmem:[#allocation2 + $0x50] sm:$0xff]
  %v49 = vld [vmem:[#allocation2 + $0x58] sm:$0xff]
  %v50 = vld [vmem:[#allocation2 + $0x60] sm:$0xff]
  %v51 = vld [vmem:[#allocation2 + $0x68] sm:$0xff]
  %v52 = vld [vmem:[#allocation2 + $0x70] sm:$0xff]
  %v53 = vld [vmem:[#allocation2 + $0x78] sm:$0xff]
  %v54 = vld [vmem:[%s0] sm:$0xf]
  %v55 = vld [vmem:[%s0 + $0x4] sm:$0xf]
  %v56 = vld [vmem:[%s0 + $0x8] sm:$0xf]
  %v57 = vld [vmem:[%s0 + $0xc] sm:$0xf]
  %v58 = vld [vmem:[%s0 + $0x10] sm:$0xf]
  %v59 = vld [vmem:[%s0 + $0x14] sm:$0xf]
  %v60 = vld [vmem:[%s0 + $0x18] sm:$0xf]
  %v61 = vld [vmem:[%s0 + $0x1c] sm:$0xf]
  %v62 = vld [vmem:[%s0 + $0x20] sm:$0xf]
  %v63 = vld [vmem:[%s0 + $0x24] sm:$0xf]
  %v64 = vld [vmem:[%s0 + $0x28] sm:$0xf]
  %v65 = vld [vmem:[%s0 + $0x2c] sm:$0xf]
  %v66 = vld [vmem:[%s0 + $0x30] sm:$0xf]
  %v67 = vld [vmem:[%s0 + $0x34] sm:$0xf]
  %v68 = vld [vmem:[%s0 + $0x38] sm:$0xf]
  %v69 = vld [vmem:[%s0 + $0x3c] sm:$0xf]
  %v70 = vld [vmem:[%s1] sm:$0xf]
  %v71 = vld [vmem:[%s1 + $0x4] sm:$0xf]
  %v72 = vld [vmem:[%s1 + $0x8] sm:$0xf]
  %v73 = vld [vmem:[%s1 + $0xc] sm:$0xf]
  %v74 = vld [vmem:[%s1 + $0x10] sm:$0xf]
  %v75 = vld [vmem:[%s1 + $0x14] sm:$0xf]
  %v76 = vld [vmem:[%s1 + $0x18] sm:$0xf]
  %v77 = vld [vmem:[%s1 + $0x1c] sm:$0xf]
  %v78 = vld [vmem:[%s1 + $0x20] sm:$0xf]
  %v79 = vld [vmem:[%s1 + $0x24] sm:$0xf]
  %v80 = vld [vmem:[%s1 + $0x28] sm:$0xf]
  %v81 = vld [vmem:[%s1 + $0x2c] sm:$0xf]
  %v82 = vld [vmem:[%s1 + $0x30] sm:$0xf]
  %v83 = vld [vmem:[%s1 + $0x34] sm:$0xf]
  %v84 = vld [vmem:[%s1 + $0x38] sm:$0xf]
  %v85 = vld [vmem:[%s1 + $0x3c] sm:$0xf]
  %v102 = vunpack.c.l.b16 %v54
  %v103 = vunpack.c.l.b16 %v55
  %v104 = vunpack.c.l.b16 %v56
  %v105 = vunpack.c.l.b16 %v57
  %v106 = vunpack.c.l.b16 %v58
  %v107 = vunpack.c.l.b16 %v59
  %v108 = vunpack.c.l.b16 %v60
  %v109 = vunpack.c.l.b16 %v61
  %v110 = vunpack.c.l.b16 %v62
  %v111 = vunpack.c.l.b16 %v63
  %v112 = vunpack.c.l.b16 %v64
  %v113 = vunpack.c.l.b16 %v65
  %v114 = vunpack.c.l.b16 %v66
  %v115 = vunpack.c.l.b16 %v67
  %v116 = vunpack.c.l.b16 %v68
  %v117 = vunpack.c.l.b16 %v69
  %v118 = vpack.c.b16 %v103, %v102
  %v119 = vpack.c.b16 %v105, %v104
  %v120 = vpack.c.b16 %v107, %v106
  %v121 = vpack.c.b16 %v109, %v108
  %v122 = vpack.c.b16 %v111, %v110
  %v123 = vpack.c.b16 %v113, %v112
  %v124 = vpack.c.b16 %v115, %v114
  %v125 = vpack.c.b16 %v117, %v116
  %v150 = vunpack.c.l.b16 %v70
  %v151 = vunpack.c.l.b16 %v71
  %v152 = vunpack.c.l.b16 %v72
  %v153 = vunpack.c.l.b16 %v73
  %v154 = vunpack.c.l.b16 %v74
  %v155 = vunpack.c.l.b16 %v75
  %v156 = vunpack.c.l.b16 %v76
  %v157 = vunpack.c.l.b16 %v77
  %v158 = vunpack.c.l.b16 %v78
  %v159 = vunpack.c.l.b16 %v79
  %v160 = vunpack.c.l.b16 %v80
  %v161 = vunpack.c.l.b16 %v81
  %v162 = vunpack.c.l.b16 %v82
  %v163 = vunpack.c.l.b16 %v83
  %v164 = vunpack.c.l.b16 %v84
  %v165 = vunpack.c.l.b16 %v85
  %v166 = vpack.c.b16 %v151, %v150
  %v167 = vpack.c.b16 %v153, %v152
  %v168 = vpack.c.b16 %v155, %v154
  %v169 = vpack.c.b16 %v157, %v156
  %v170 = vpack.c.b16 %v159, %v158
  %v171 = vpack.c.b16 %v161, %v160
  %v172 = vpack.c.b16 %v163, %v162
  %v173 = vpack.c.b16 %v165, %v164
  %182 = vmatprep.subr.bf16.mxu0 0
  %183 = vmatpush1.bf16.msra.mxu0 %v166
  %184 = vmatprep.subr.bf16.mxu0 0
  %185 = vmatpush1.bf16.msra.mxu0 %v167
  %186 = vmatprep.subr.bf16.mxu0 0
  %187 = vmatpush1.bf16.msra.mxu0 %v168
  %188 = vmatprep.subr.bf16.mxu0 0
  %189 = vmatpush1.bf16.msra.mxu0 %v169
  %190 = vmatprep.subr.bf16.mxu0 0
  %191 = vmatpush1.bf16.msra.mxu0 %v170
  %192 = vmatprep.subr.bf16.mxu0 0
  %193 = vmatpush1.bf16.msra.mxu0 %v171
  %194 = vmatprep.subr.bf16.mxu0 0
  %195 = vmatpush1.bf16.msra.mxu0 %v172
  %196 = vmatprep.subr.bf16.mxu0 0
  %197 = vmatpush1.bf16.msra.mxu0 %v173
  %198 = vmatprep.subr.bf16.mxu0 0
  %199 = vmatpush1.bf16.msra.mxu0 0
  %200 = vmatprep.subr.bf16.mxu0 0
  %201 = vmatpush1.bf16.msra.mxu0 0
  %202 = vmatprep.subr.bf16.mxu0 0
  %203 = vmatpush1.bf16.msra.mxu0 0
  %204 = vmatprep.subr.bf16.mxu0 0
  %205 = vmatpush1.bf16.msra.mxu0 0
  %206 = vmatprep.subr.bf16.mxu0 0
  %207 = vmatpush1.bf16.msra.mxu0 0
  %208 = vmatprep.subr.bf16.mxu0 0
  %209 = vmatpush1.bf16.msra.mxu0 0
  %210 = vmatprep.subr.bf16.mxu0 0
  %211 = vmatpush1.bf16.msra.mxu0 0
  %212 = vmatprep.subr.bf16.mxu0 0
  %213 = vmatpush1.bf16.msra.mxu0 0
  %214 = vmatprep.mubr.bf16.mxu0 0
  %215 = vmatmul.mubr.bf16.gmra.mrb[0].mxu0 %v118
  %v216 = vpop.f32.mrb[0].mxu0
  %v217 = vadd.f32 0.0, %v216
  %v218 = vpop.f32.mrb[0].mxu0
  %v219 = vpop.f32.mrb[0].mxu0
  %v220 = vadd.f32 0.0, %v219
  %v221 = vpop.f32.mrb[0].mxu0
  %222 = vmatprep.mubr.bf16.mxu0 0
  %223 = vmatmul.mubr.bf16.gmra.mrb[0].mxu0 %v119
  %v224 = vpop.f32.mrb[0].mxu0
  %v225 = vadd.f32 0.0, %v224
  %v226 = vpop.f32.mrb[0].mxu0
  %v227 = vpop.f32.mrb[0].mxu0
  %v228 = vadd.f32 0.0, %v227
  %v229 = vpop.f32.mrb[0].mxu0
  %230 = vmatprep.mubr.bf16.mxu0 0
  %231 = vmatmul.mubr.bf16.gmra.mrb[0].mxu0 %v120
  %v232 = vpop.f32.mrb[0].mxu0
  %v233 = vadd.f32 0.0, %v232
  %v234 = vpop.f32.mrb[0].mxu0
  %v235 = vpop.f32.mrb[0].mxu0
  %v236 = vadd.f32 0.0, %v235
  %v237 = vpop.f32.mrb[0].mxu0
  %238 = vmatprep.mubr.bf16.mxu0 0
  %239 = vmatmul.mubr.bf16.gmra.mrb[0].mxu0 %v121
  %v240 = vpop.f32.mrb[0].mxu0
  %v241 = vadd.f32 0.0, %v240
  %v242 = vpop.f32.mrb[0].mxu0
  %v243 = vpop.f32.mrb[0].mxu0
  %v244 = vadd.f32 0.0, %v243
  %v245 = vpop.f32.mrb[0].mxu0
  %246 = vmatprep.mubr.bf16.mxu0 0
  %247 = vmatmul.mubr.bf16.gmra.mrb[0].mxu0 %v122
  %v248 = vpop.f32.mrb[0].mxu0
  %v249 = vadd.f32 0.0, %v248
  %v250 = vpop.f32.mrb[0].mxu0
  %v251 = vpop.f32.mrb[0].mxu0
  %v252 = vadd.f32 0.0, %v251
  %v253 = vpop.f32.mrb[0].mxu0
  %254 = vmatprep.mubr.bf16.mxu0 0
  %255 = vmatmul.mubr.bf16.gmra.mrb[0].mxu0 %v123
  %v256 = vpop.f32.mrb[0].mxu0
  %v257 = vadd.f32 0.0, %v256
  %v258 = vpop.f32.mrb[0].mxu0
  %v259 = vpop.f32.mrb[0].mxu0
  %v260 = vadd.f32 0.0, %v259
  %v261 = vpop.f32.mrb[0].mxu0
  %262 = vmatprep.mubr.bf16.mxu0 0
  %263 = vmatmul.mubr.bf16.gmra.mrb[0].mxu0 %v124
  %v264 = vpop.f32.mrb[0].mxu0
  %v265 = vadd.f32 0.0, %v264
  %v266 = vpop.f32.mrb[0].mxu0
  %v267 = vpop.f32.mrb[0].mxu0
  %v268 = vadd.f32 0.0, %v267
  %v269 = vpop.f32.mrb[0].mxu0
  %270 = vmatprep.mubr.bf16.mxu0 0
  %271 = vmatmul.mubr.bf16.gmra.mrb[0].mxu0 %v125
  %v272 = vpop.f32.mrb[0].mxu0
  %v273 = vadd.f32 0.0, %v272
  %v274 = vpop.f32.mrb[0].mxu0
  %v275 = vpop.f32.mrb[0].mxu0
  %v276 = vadd.f32 0.0, %v275
  %v277 = vpop.f32.mrb[0].mxu0
  %278 = vdwg.mxu0
  %v279 = vadd.f32 %v38, %v217
  %v280 = vadd.f32 %v39, %v220
  %v281 = vadd.f32 %v40, %v225
  %v282 = vadd.f32 %v41, %v228
  %v283 = vadd.f32 %v42, %v233
  %v284 = vadd.f32 %v43, %v236
  %v285 = vadd.f32 %v44, %v241
  %v286 = vadd.f32 %v45, %v244
  %v287 = vadd.f32 %v46, %v249
  %v288 = vadd.f32 %v47, %v252
  %v289 = vadd.f32 %v48, %v257
  %v290 = vadd.f32 %v49, %v260
  %v291 = vadd.f32 %v50, %v265
  %v292 = vadd.f32 %v51, %v268
  %v293 = vadd.f32 %v52, %v273
  %v294 = vadd.f32 %v53, %v276
  %295 = vst [vmem:[#allocation2] sm:$0xff] %v279
  %296 = vst [vmem:[#allocation2 + $0x8] sm:$0xff] %v280
  %297 = vst [vmem:[#allocation2 + $0x10] sm:$0xff] %v281
  %298 = vst [vmem:[#allocation2 + $0x18] sm:$0xff] %v282
  %299 = vst [vmem:[#allocation2 + $0x20] sm:$0xff] %v283
  %300 = vst [vmem:[#allocation2 + $0x28] sm:$0xff] %v284
  %301 = vst [vmem:[#allocation2 + $0x30] sm:$0xff] %v285
  %302 = vst [vmem:[#allocation2 + $0x38] sm:$0xff] %v286
  %303 = vst [vmem:[#allocation2 + $0x40] sm:$0xff] %v287
  %304 = vst [vmem:[#allocation2 + $0x48] sm:$0xff] %v288
  %305 = vst [vmem:[#allocation2 + $0x50] sm:$0xff] %v289
  %306 = vst [vmem:[#allocation2 + $0x58] sm:$0xff] %v290
  %307 = vst [vmem:[#allocation2 + $0x60] sm:$0xff] %v291
  %308 = vst [vmem:[#allocation2 + $0x68] sm:$0xff] %v292
  %309 = vst [vmem:[#allocation2 + $0x70] sm:$0xff] %v293
  %310 = vst [vmem:[#allocation2 + $0x78] sm:$0xff] %v294
  // Predicated region
  $region22: #{_forward_padded.7} parent=0 // pred_check
    %p311 = pneg %p18
  $region23: #{_forward_padded.7} parent=0 // pred_check_branch
    %313 = sbr.rel (%p311) target = $region25
  $region24: #{_forward_padded.7} parent=0 // pred_region
    %v314 = vld [vmem:[#allocation2] sm:$0xff]
    %v315 = vld [vmem:[#allocation2 + $0x8] sm:$0xff]
    %v316 = vld [vmem:[#allocation2 + $0x10] sm:$0xff]
    %v317 = vld [vmem:[#allocation2 + $0x18] sm:$0xff]
    %v318 = vld [vmem:[#allocation2 + $0x20] sm:$0xff]
    %v319 = vld [vmem:[#allocation2 + $0x28] sm:$0xff]
    %v320 = vld [vmem:[#allocation2 + $0x30] sm:$0xff]
    %v321 = vld [vmem:[#allocation2 + $0x38] sm:$0xff]
    %v322 = vld [vmem:[#allocation2 + $0x40] sm:$0xff]
    %v323 = vld [vmem:[#allocation2 + $0x48] sm:$0xff]
    %v324 = vld [vmem:[#allocation2 + $0x50] sm:$0xff]
    %v325 = vld [vmem:[#allocation2 + $0x58] sm:$0xff]
    %v326 = vld [vmem:[#allocation2 + $0x60] sm:$0xff]
    %v327 = vld [vmem:[#allocation2 + $0x68] sm:$0xff]
    %v328 = vld [vmem:[#allocation2 + $0x70] sm:$0xff]
    %v329 = vld [vmem:[#allocation2 + $0x78] sm:$0xff]
    %v330 = vld [vmem:[%s3] sm:$0xff]
    %v331 = vld [vmem:[%s3 + $0x8] sm:$0xff]
    %v332 = vld [vmem:[%s3 + $0x10] sm:$0xff]
    %v333 = vld [vmem:[%s3 + $0x18] sm:$0xff]
    %v334 = vld [vmem:[%s3 + $0x20] sm:$0xff]
    %v335 = vld [vmem:[%s3 + $0x28] sm:$0xff]
    %v336 = vld [vmem:[%s3 + $0x30] sm:$0xff]
    %v337 = vld [vmem:[%s3 + $0x38] sm:$0xff]
    %v338 = vld [vmem:[%s3 + $0x40] sm:$0xff]
    %v339 = vld [vmem:[%s3 + $0x48] sm:$0xff]
    %v340 = vld [vmem:[%s3 + $0x50] sm:$0xff]
    %v341 = vld [vmem:[%s3 + $0x58] sm:$0xff]
    %v342 = vld [vmem:[%s3 + $0x60] sm:$0xff]
    %v343 = vld [vmem:[%s3 + $0x68] sm:$0xff]
    %v344 = vld [vmem:[%s3 + $0x70] sm:$0xff]
    %v345 = vld [vmem:[%s3 + $0x78] sm:$0xff]
    %347 = vset.pattern.permute.xlu0 0
    %348 = vperm.xlu0 %347, %v330
    %v349 = vpop.permute.xlu0 %348
    %352 = vset.pattern.permute.xlu0 0
    %353 = vperm.xlu0 %352, %v331
    %v354 = vpop.permute.xlu0 %353
    %357 = vset.pattern.permute.xlu0 0
    %358 = vperm.xlu0 %357, %v332
    %v359 = vpop.permute.xlu0 %358
    %362 = vset.pattern.permute.xlu0 0
    %363 = vperm.xlu0 %362, %v333
    %v364 = vpop.permute.xlu0 %363
    %367 = vset.pattern.permute.xlu0 0
    %368 = vperm.xlu0 %367, %v334
    %v369 = vpop.permute.xlu0 %368
    %372 = vset.pattern.permute.xlu0 0
    %373 = vperm.xlu0 %372, %v335
    %v374 = vpop.permute.xlu0 %373
    %377 = vset.pattern.permute.xlu0 0
    %378 = vperm.xlu0 %377, %v336
    %v379 = vpop.permute.xlu0 %378
    %382 = vset.pattern.permute.xlu0 0
    %383 = vperm.xlu0 %382, %v337
    %v384 = vpop.permute.xlu0 %383
    %387 = vset.pattern.permute.xlu0 0
    %388 = vperm.xlu0 %387, %v338
    %v389 = vpop.permute.xlu0 %388
    %392 = vset.pattern.permute.xlu0 0
    %393 = vperm.xlu0 %392, %v339
    %v394 = vpop.permute.xlu0 %393
    %397 = vset.pattern.permute.xlu0 0
    %398 = vperm.xlu0 %397, %v340
    %v399 = vpop.permute.xlu0 %398
    %402 = vset.pattern.permute.xlu0 0
    %403 = vperm.xlu0 %402, %v341
    %v404 = vpop.permute.xlu0 %403
    %407 = vset.pattern.permute.xlu0 0
    %408 = vperm.xlu0 %407, %v342
    %v409 = vpop.permute.xlu0 %408
    %412 = vset.pattern.permute.xlu0 0
    %413 = vperm.xlu0 %412, %v343
    %v414 = vpop.permute.xlu0 %413
    %417 = vset.pattern.permute.xlu0 0
    %418 = vperm.xlu0 %417, %v344
    %v419 = vpop.permute.xlu0 %418
    %422 = vset.pattern.permute.xlu0 0
    %423 = vperm.xlu0 %422, %v345
    %v424 = vpop.permute.xlu0 %423
    %v426 = vmul.f32 %v314, %v349
    %v427 = vmul.f32 %v315, %v354
    %v428 = vmul.f32 %v316, %v359
    %v429 = vmul.f32 %v317, %v364
    %v430 = vmul.f32 %v318, %v369
    %v431 = vmul.f32 %v319, %v374
    %v432 = vmul.f32 %v320, %v379
    %v433 = vmul.f32 %v321, %v384
    %v434 = vmul.f32 %v322, %v389
    %v435 = vmul.f32 %v323, %v394
    %v436 = vmul.f32 %v324, %v399
    %v437 = vmul.f32 %v325, %v404
    %v438 = vmul.f32 %v326, %v409
    %v439 = vmul.f32 %v327, %v414
    %v440 = vmul.f32 %v328, %v419
    %v441 = vmul.f32 %v329, %v424
    %v442 = vld [vmem:[%s2] sm:$0xff]
    %v443 = vld [vmem:[%s2 + $0x8] sm:$0xff]
    %v444 = vld [vmem:[%s2 + $0x10] sm:$0xff]
    %v445 = vld [vmem:[%s2 + $0x18] sm:$0xff]
    %v446 = vld [vmem:[%s2 + $0x20] sm:$0xff]
    %v447 = vld [vmem:[%s2 + $0x28] sm:$0xff]
    %v448 = vld [vmem:[%s2 + $0x30] sm:$0xff]
    %v449 = vld [vmem:[%s2 + $0x38] sm:$0xff]
    %v450 = vld [vmem:[%s2 + $0x40] sm:$0xff]
    %v451 = vld [vmem:[%s2 + $0x48] sm:$0xff]
    %v452 = vld [vmem:[%s2 + $0x50] sm:$0xff]
    %v453 = vld [vmem:[%s2 + $0x58] sm:$0xff]
    %v454 = vld [vmem:[%s2 + $0x60] sm:$0xff]
    %v455 = vld [vmem:[%s2 + $0x68] sm:$0xff]
    %v456 = vld [vmem:[%s2 + $0x70] sm:$0xff]
    %v457 = vld [vmem:[%s2 + $0x78] sm:$0xff]
    %v458 = vadd.f32 %v426, %v442
    %v459 = vadd.f32 %v427, %v443
    %v460 = vadd.f32 %v428, %v444
    %v461 = vadd.f32 %v429, %v445
    %v462 = vadd.f32 %v430, %v446
    %v463 = vadd.f32 %v431, %v447
    %v464 = vadd.f32 %v432, %v448
    %v465 = vadd.f32 %v433, %v449
    %v466 = vadd.f32 %v434, %v450
    %v467 = vadd.f32 %v435, %v451
    %v468 = vadd.f32 %v436, %v452
    %v469 = vadd.f32 %v437, %v453
    %v470 = vadd.f32 %v438, %v454
    %v471 = vadd.f32 %v439, %v455
    %v472 = vadd.f32 %v440, %v456
    %v473 = vadd.f32 %v441, %v457
    %v474 = vmax.f32 %v458, 0.0
    %v475 = vmax.f32 %v459, 0.0
    %v476 = vmax.f32 %v460, 0.0
    %v477 = vmax.f32 %v461, 0.0
    %v478 = vmax.f32 %v462, 0.0
    %v479 = vmax.f32 %v463, 0.0
    %v480 = vmax.f32 %v464, 0.0
    %v481 = vmax.f32 %v465, 0.0
    %v482 = vmax.f32 %v466, 0.0
    %v483 = vmax.f32 %v467, 0.0
    %v484 = vmax.f32 %v468, 0.0
    %v485 = vmax.f32 %v469, 0.0
    %v486 = vmax.f32 %v470, 0.0
    %v487 = vmax.f32 %v471, 0.0
    %v488 = vmax.f32 %v472, 0.0
    %v489 = vmax.f32 %v473, 0.0
    %490 = vst [vmem:[%s4] sm:$0xff] %v474
    %491 = vst [vmem:[%s4 + $0x8] sm:$0xff] %v475
    %492 = vst [vmem:[%s4 + $0x10] sm:$0xff] %v476
    %493 = vst [vmem:[%s4 + $0x18] sm:$0xff] %v477
    %494 = vst [vmem:[%s4 + $0x20] sm:$0xff] %v478
    %495 = vst [vmem:[%s4 + $0x28] sm:$0xff] %v479
    %496 = vst [vmem:[%s4 + $0x30] sm:$0xff] %v480
    %497 = vst [vmem:[%s4 + $0x38] sm:$0xff] %v481
    %498 = vst [vmem:[%s4 + $0x40] sm:$0xff] %v482
    %499 = vst [vmem:[%s4 + $0x48] sm:$0xff] %v483
    %500 = vst [vmem:[%s4 + $0x50] sm:$0xff] %v484
    %501 = vst [vmem:[%s4 + $0x58] sm:$0xff] %v485
    %502 = vst [vmem:[%s4 + $0x60] sm:$0xff] %v486
    %503 = vst [vmem:[%s4 + $0x68] sm:$0xff] %v487
    %504 = vst [vmem:[%s4 + $0x70] sm:$0xff] %v488
    %505 = vst [vmem:[%s4 + $0x78] sm:$0xff] %v489
  $region25: #{_forward_padded.7} parent=0 // pred_fallthru
    _
  // Predicated region
  $region26: #{_forward_padded.7} parent=0 // pred_check
    _
  $region27: #{_forward_padded.7} parent=0 // pred_check_branch
    %507 = sbr.rel (0) target = $region29
  $region28: #{_forward_padded.7} parent=0 // pred_region
    _
  $region29: #{_forward_padded.7} parent=0 // pred_fallthru
    _
  // Predicated region
  $region30: #{_forward_padded.7} parent=0 // pred_check
    _
  $region31: #{_forward_padded.7} parent=0 // pred_check_branch
    %509 = sbr.rel (0) target = $region33
  $region32: #{_forward_padded.7} parent=0 // pred_region
    _
  $region33: #{_forward_padded.7} parent=0 // pred_fallthru
    _

</llo_original>
